<compile_context>
chip_gen: v7x
topology: tpu7x:2x2x1
jax: 0.10.0
libtpu: 0.0.40
codegen_flags: <defaults>
</compile_context>

<pallas_src>
import math

import jax
import jax.numpy as jnp
from jax.experimental import pallas as pl
from jax.experimental.pallas import tpu as pltpu


def periodic_kernel(x_ref, coeff_ref, phase_ref, out_ref):
    """One batch block per grid step.

    x_ref:     (bb, F)            one scalar per (row, feature)
    coeff_ref: (1, 2*dim*F)       2*pi*coeff, channel-major/feature-minor (resident)
    phase_ref: (1, 2*dim*F)       0 for cos channels, pi/2 for sin channels (resident)
    out_ref:   (bb, 2*dim*F)      packed output slab (lane-dense)
    """
    reps = out_ref.shape[-1] // x_ref.shape[-1]          # = 2*dim (static)
    # Replicate the F feature scalars across the 2*dim channels along lanes:
    # xt[b, c*F + f] = x[b, f].  Rides the XLU; VPU/EUP do the real work.
    xt = jnp.tile(x_ref[...], (1, reps))                 # (bb, 2*dim*F)
    # Fused cos/sin on the EUP:  sin(z) == cos(z - pi/2).
    out_ref[...] = jnp.cos(coeff_ref[...] * xt - phase_ref[...])


def periodic_encode(x, coefficients, *, block_b=256):
    """x: (B, 1, F) float32 (NCW); coefficients: (F, dim)  ->  (B, 2*dim, F)."""
    B, C, F = x.shape
    assert C == 1, "PeriodicEncoder expects a single numeric channel per feature"
    Fc, dim = coefficients.shape
    assert Fc == F
    two_dim = 2 * dim
    W = two_dim * F                                      # packed lane width

    # ---- wrapper-side constant prep (O(F*dim), layout plumbing only) ----
    # Channel-major / feature-minor packed coefficients and phases:
    #   coeff_cm[c, f] = coeff[f, c]         for c <  dim   (cos half)
    #                  = coeff[f, c - dim]   for c >= dim   (sin half)
    coeff_cm = jnp.concatenate([coefficients.T, coefficients.T], axis=0)   # (2*dim, F)
    coeff_flat = ((2.0 * math.pi) * coeff_cm).astype(x.dtype).reshape(1, W)
    phase_flat = jnp.concatenate(
        [jnp.zeros((dim, F), x.dtype),
         jnp.full((dim, F), 0.5 * math.pi, x.dtype)], axis=0).reshape(1, W)
    x2d = x.reshape(B, F)                                # free reshape of (B,1,F)

    # ---- batch blocking: sublane-aligned, >= 2 blocks for v7x megacore ----
    bb = max(1, min(block_b, B))
    if bb < B:
        bb = ((bb + 7) // 8) * 8                         # sublane multiple
    num_blocks = pl.cdiv(B, bb)
    if num_blocks < 2 and B > 8:
        bb = ((pl.cdiv(B, 2) + 7) // 8) * 8              # two blocks -> both TCs
        num_blocks = pl.cdiv(B, bb)
    Bp = num_blocks * bb
    if Bp != B:
        x2d = jnp.pad(x2d, ((0, Bp - B), (0, 0)))        # pad rows compute cos(0)

    out2d = pl.pallas_call(
        periodic_kernel,
        out_shape=jax.ShapeDtypeStruct((Bp, W), x.dtype),
        grid_spec=pltpu.PrefetchScalarGridSpec(
            num_scalar_prefetch=0,
            grid=(num_blocks,),
            in_specs=[
                pl.BlockSpec((bb, F), lambda b: (b, 0)),      # contiguous row DMA
                pl.BlockSpec((1, W), lambda b: (0, 0)),       # resident constant
                pl.BlockSpec((1, W), lambda b: (0, 0)),       # resident constant
            ],
            out_specs=pl.BlockSpec((bb, W), lambda b: (b, 0)),  # lane-dense slab
        ),
        compiler_params=pltpu.CompilerParams(
            dimension_semantics=("parallel",),
            vmem_limit_bytes=32 * 1024 * 1024,
        ),
        cost_estimate=pl.CostEstimate(
            flops=2 * Bp * W,                     # mul + sub per output element
            transcendentals=Bp * W,               # one cos per output element
            bytes_accessed=4 * (Bp * W + Bp * F + 2 * W),
        ),
    )(x2d, coeff_flat, phase_flat)

    # Packed slab is channel-major/feature-minor -> contiguous, zero-cost reshape.
    out2d = out2d[:B] if Bp != B else out2d
    return out2d.reshape(B, two_dim, F)


def reference(x, coefficients):
    """Pure-JAX replica of the PyTorch forward (for correctness check)."""
    xt = jnp.transpose(x, (0, 2, 1))                          # (B, F, 1)
    t = 2.0 * math.pi * coefficients * xt                     # (B, F, dim)
    enc = jnp.concatenate([jnp.cos(t), jnp.sin(t)], axis=-1)  # (B, F, 2*dim)
    return jnp.transpose(enc, (0, 2, 1))                      # (B, 2*dim, F)


def make_coefficients(feature, dim, sigma, init_mode="log-linear"):
    """Deterministic parameter init matching PeriodicEncoder.__init__."""
    if init_mode == "log-linear":
        coeff = sigma ** (jnp.arange(dim, dtype=jnp.float32) / dim)   # (dim,)
        coeff = jnp.tile(coeff[None, :], (feature, 1))                # (F, dim)
    else:  # 'normal'
        coeff = sigma * jax.random.normal(
            jax.random.PRNGKey(42), (feature, dim), dtype=jnp.float32)
    return coeff


if __name__ == "__main__":
    # config: num_channels=16 features, period_dim=64 (-> out_channels=128),
    #         period_sigma=2.0, period_init='log-linear'.
    # B=12 exercises the 2-block "parallel" grid (v7x both cores) and the
    # padded remainder block (bb=8, Bp=16).
    B, F, DIM, SIGMA = 12, 16, 64, 2.0

    key = jax.random.PRNGKey(0)
    x = jax.random.normal(key, (B, 1, F), dtype=jnp.float32)
    coefficients = make_coefficients(F, DIM, SIGMA, "log-linear")

    out = jax.block_until_ready(periodic_encode(x, coefficients))
    ref = reference(x, coefficients)

    assert out.shape == (B, 2 * DIM, F), out.shape
    # sin/cos outputs are bounded by 1, so absolute error is the right metric.
    # cos(z - pi/2) == sin(z) is exact analytically; the tolerance only covers
    # transcendental-implementation differences between the kernel path and
    # the XLA reference, while any indexing/layout bug would be O(1).
    max_err = float(jnp.max(jnp.abs(out - ref)))
    assert max_err < 5e-4, f"mismatch vs reference (max abs err {max_err})"

    print("KERNEL_OK")
</pallas_src>

<mosaic_0001>
module attributes {stable_mosaic.version = 11 : i64} {
  func.func @periodic_kernel(%arg0: i32, %arg1: memref<8x16xf32, #tpu.memory_space<vmem>>, %arg2: memref<1x2048xf32, #tpu.memory_space<vmem>>, %arg3: memref<1x2048xf32, #tpu.memory_space<vmem>>, %arg4: memref<8x2048xf32, #tpu.memory_space<vmem>>) attributes {dimension_semantics = [#tpu.dimension_semantics<parallel>], iteration_bounds = array<i64: 2>, scalar_prefetch = 0 : i64, scratch_operands = 0 : i64, tpu.core_type = #tpu.core_type<tc>, window_params = [{transform_indices = @transform_0, window_bounds = array<i64: 8, 16>}, {pipeline_mode = #tpu.pipeline_mode<synchronous>, transform_indices = @transform_1, window_bounds = array<i64: 1, 2048>}, {pipeline_mode = #tpu.pipeline_mode<synchronous>, transform_indices = @transform_2, window_bounds = array<i64: 1, 2048>}, {transform_indices = @transform_3, window_bounds = array<i64: 8, 2048>}]} {
    %c0 = arith.constant 0 : index
    %c0_0 = arith.constant 0 : index
    %0 = vector.load %arg1[%c0, %c0_0] : memref<8x16xf32, #tpu.memory_space<vmem>>, vector<8x16xf32>
    %1 = tpu.concatenate %0, %0, %0, %0, %0, %0, %0, %0, %0, %0, %0, %0, %0, %0, %0, %0, %0, %0, %0, %0, %0, %0, %0, %0, %0, %0, %0, %0, %0, %0, %0, %0, %0, %0, %0, %0, %0, %0, %0, %0, %0, %0, %0, %0, %0, %0, %0, %0, %0, %0, %0, %0, %0, %0, %0, %0, %0, %0, %0, %0, %0, %0, %0, %0, %0, %0, %0, %0, %0, %0, %0, %0, %0, %0, %0, %0, %0, %0, %0, %0, %0, %0, %0, %0, %0, %0, %0, %0, %0, %0, %0, %0, %0, %0, %0, %0, %0, %0, %0, %0, %0, %0, %0, %0, %0, %0, %0, %0, %0, %0, %0, %0, %0, %0, %0, %0, %0, %0, %0, %0, %0, %0, %0, %0, %0, %0, %0, %0 in 1 : vector<8x16xf32>, vector<8x16xf32>, vector<8x16xf32>, vector<8x16xf32>, vector<8x16xf32>, vector<8x16xf32>, vector<8x16xf32>, vector<8x16xf32>, vector<8x16xf32>, vector<8x16xf32>, vector<8x16xf32>, vector<8x16xf32>, vector<8x16xf32>, vector<8x16xf32>, vector<8x16xf32>, vector<8x16xf32>, vector<8x16xf32>, vector<8x16xf32>, vector<8x16xf32>, vector<8x16xf32>, vector<8x16xf32>, vector<8x16xf32>, vector<8x16xf32>, vector<8x16xf32>, vector<8x16xf32>, vector<8x16xf32>, vector<8x16xf32>, vector<8x16xf32>, vector<8x16xf32>, vector<8x16xf32>, vector<8x16xf32>, vector<8x16xf32>, vector<8x16xf32>, vector<8x16xf32>, vector<8x16xf32>, vector<8x16xf32>, vector<8x16xf32>, vector<8x16xf32>, vector<8x16xf32>, vector<8x16xf32>, vector<8x16xf32>, vector<8x16xf32>, vector<8x16xf32>, vector<8x16xf32>, vector<8x16xf32>, vector<8x16xf32>, vector<8x16xf32>, vector<8x16xf32>, vector<8x16xf32>, vector<8x16xf32>, vector<8x16xf32>, vector<8x16xf32>, vector<8x16xf32>, vector<8x16xf32>, vector<8x16xf32>, vector<8x16xf32>, vector<8x16xf32>, vector<8x16xf32>, vector<8x16xf32>, vector<8x16xf32>, vector<8x16xf32>, vector<8x16xf32>, vector<8x16xf32>, vector<8x16xf32>, vector<8x16xf32>, vector<8x16xf32>, vector<8x16xf32>, vector<8x16xf32>, vector<8x16xf32>, vector<8x16xf32>, vector<8x16xf32>, vector<8x16xf32>, vector<8x16xf32>, vector<8x16xf32>, vector<8x16xf32>, vector<8x16xf32>, vector<8x16xf32>, vector<8x16xf32>, vector<8x16xf32>, vector<8x16xf32>, vector<8x16xf32>, vector<8x16xf32>, vector<8x16xf32>, vector<8x16xf32>, vector<8x16xf32>, vector<8x16xf32>, vector<8x16xf32>, vector<8x16xf32>, vector<8x16xf32>, vector<8x16xf32>, vector<8x16xf32>, vector<8x16xf32>, vector<8x16xf32>, vector<8x16xf32>, vector<8x16xf32>, vector<8x16xf32>, vector<8x16xf32>, vector<8x16xf32>, vector<8x16xf32>, vector<8x16xf32>, vector<8x16xf32>, vector<8x16xf32>, vector<8x16xf32>, vector<8x16xf32>, vector<8x16xf32>, vector<8x16xf32>, vector<8x16xf32>, vector<8x16xf32>, vector<8x16xf32>, vector<8x16xf32>, vector<8x16xf32>, vector<8x16xf32>, vector<8x16xf32>, vector<8x16xf32>, vector<8x16xf32>, vector<8x16xf32>, vector<8x16xf32>, vector<8x16xf32>, vector<8x16xf32>, vector<8x16xf32>, vector<8x16xf32>, vector<8x16xf32>, vector<8x16xf32>, vector<8x16xf32>, vector<8x16xf32>, vector<8x16xf32>, vector<8x16xf32>, vector<8x16xf32> -> vector<8x2048xf32>
    %c0_1 = arith.constant 0 : index
    %c0_2 = arith.constant 0 : index
    %2 = vector.load %arg2[%c0_1, %c0_2] : memref<1x2048xf32, #tpu.memory_space<vmem>>, vector<1x2048xf32>
    %3 = vector.broadcast %2 : vector<1x2048xf32> to vector<8x2048xf32>
    %4 = arith.mulf %3, %1 : vector<8x2048xf32>
    %c0_3 = arith.constant 0 : index
    %c0_4 = arith.constant 0 : index
    %5 = vector.load %arg3[%c0_3, %c0_4] : memref<1x2048xf32, #tpu.memory_space<vmem>>, vector<1x2048xf32>
    %6 = vector.broadcast %5 : vector<1x2048xf32> to vector<8x2048xf32>
    %7 = arith.subf %4, %6 : vector<8x2048xf32>
    %8 = math.cos %7 : vector<8x2048xf32>
    %c0_5 = arith.constant 0 : index
    %c0_6 = arith.constant 0 : index
    %9 = vector.load %arg4[%c0_5, %c0_6] : memref<8x2048xf32, #tpu.memory_space<vmem>>, vector<8x2048xf32>
    tpu.vector_store %arg4[%c0_5, %c0_6], %8 {strides = array<i32>} : memref<8x2048xf32, #tpu.memory_space<vmem>>, vector<8x2048xf32>,
    return
  }
  func.func @transform_0(%arg0: i32) -> (i32, i32) {
    %c0_i32 = arith.constant 0 : i32
    %c0_i32_0 = arith.constant 0 : i32
    return %arg0, %c0_i32 : i32, i32
  }
  func.func @transform_1(%arg0: i32) -> (i32, i32) {
    %c0_i32 = arith.constant 0 : i32
    %c0_i32_0 = arith.constant 0 : i32
    %c0_i32_1 = arith.constant 0 : i32
    return %c0_i32, %c0_i32_0 : i32, i32
  }
  func.func @transform_2(%arg0: i32) -> (i32, i32) {
    %c0_i32 = arith.constant 0 : i32
    %c0_i32_0 = arith.constant 0 : i32
    %c0_i32_1 = arith.constant 0 : i32
    return %c0_i32, %c0_i32_0 : i32, i32
  }
  func.func @transform_3(%arg0: i32) -> (i32, i32) {
    %c0_i32 = arith.constant 0 : i32
    %c0_i32_0 = arith.constant 0 : i32
    return %arg0, %c0_i32 : i32, i32
  }
}

</mosaic_0001>

<llo_original>
// kernel: tpu_custom_call.1
$region0: #{tpu_custom_call.1}
  #allocation0 [shape = 'u32[]', space=smem, size = 0x4, offset = 0x4, fixed_abs, tag = 'smem constant byte address 0x4 - core index']
  #allocation1 [shape = 'u32[144,128]{1,0:T(1,128)}', space=vmem, size = 0x12000, scoped, tag = 'internal scratch']
  %s0 = inlined_call_operand.hbm [shape: f32[16,16], index: 0, kind: input, shape index: {}]
  %s1 = inlined_call_operand.hbm [shape: f32[1,2048], index: 1, kind: input, shape index: {}]
  %s2 = inlined_call_operand.hbm [shape: f32[1,2048], index: 2, kind: input, shape index: {}]
  %s3 = inlined_call_operand.hbm [shape: f32[16,2048], index: 3, kind: output, shape index: {}]
  %s4 = sld [smem:[#allocation0]]
  $region57: #{tpu_custom_call.1} parent=0
    _
  %s6 = ssub.s32 1, %s4
  %s7 = scalar_select 0, %s6, %s4
  $region1: #{tpu_custom_call.1} parent=0
    #allocation2 [shape = 'u8[8192]{0}', space=vmem, size = 0x2000, scoped, tag = 'input window, operand 0']
    #allocation3 [shape = 's32[2]{0}', space=sflag, size = 0x8, scoped, tag = 'scoped memory for tpu_custom_call.1']
    #allocation4 [shape = 's32[2]{0}', space=sflag, size = 0x8, scoped, tag = 'scoped memory for tpu_custom_call.1']
    #allocation5 [shape = 'u8[8192]{0}', space=vmem, size = 0x2000, scoped, tag = 'input window, operand 1, single buffered']
    #allocation6 [shape = 's32[1]{0}', space=sflag, size = 0x4, scoped, tag = 'scoped memory for tpu_custom_call.1']
    #allocation7 [shape = 'u8[8192]{0}', space=vmem, size = 0x2000, scoped, tag = 'input window, operand 2, single buffered']
    #allocation8 [shape = 'u8[131072]{0}', space=vmem, size = 0x20000, scoped, tag = 'output window, operand 0']
    %8 = vsyncpa [#allocation3], 0
    %s9 = scalar_lea.sflag [#allocation3], 1
    %10 = vsyncpa %s9, 0
    %11 = vsyncpa [#allocation6], 0
    %12 = vsyncpa [#allocation4], 0
    %s13 = scalar_lea.sflag [#allocation4], 1
    %14 = vsyncpa %s13, 0
    loop: start=0, step=1, limit=4
    $region2: #{tpu_custom_call.1} parent=1 // loop_pre_header
      _
    $region3: #{tpu_custom_call.1} parent=1 // loop_header
      %s16 = sphi 0, %s20
      %p17 = scmp.ge.s32.totalorder %s16, 4
      %s26 = sphi 0, %s28
      %s29 = sphi 0, %s26
      %s30 = sphi 0, %s29
      %s46 = sphi 0, %s30
      %s50 = sphi 0, %s50
      %s52 = sphi 0, %s50
      %s53 = sphi 0, %s52
      %s67 = sphi 0, %s53
      %s71 = sphi 0, %s71
      %s73 = sphi 0, %s71
      %s74 = sphi 0, %s73
      %s88 = sphi 0, %s74
      %s94 = sphi 0, %s96
      %s97 = sphi 0, %s94
      %s98 = sphi 0, %s97
      %s114 = sphi 0, %s98
    $region4: #{tpu_custom_call.1} parent=1 // loop_header_branch
      %19 = sbr.rel (%p17) target = $region8
    $region5: #{tpu_custom_call.1} parent=1 // loop_body
      %s21 = ssub.s32 %s16, 1
      %s22 = ssub.s32 %s16, 2
      %s23 = sadd.s32 %s16, 1
      %s24 = ssub.s32 %s16, %s23
      %p25 = scmp.eq.s32.totalorder %s24, 0
      %s27 = sadd.s32 %s26, 1
      %s28 = scalar_select %p25, %s26, %s27
      %p31 = pneg %p25
      %p32 = scmp.eq.s32.totalorder %s16, 1
      %p33 = por %p31, %p32
      %p34 = scmp.ne.s32.totalorder %s26, %s29
      %p35 = scmp.eq.s32.totalorder %s16, 0
      %p36 = por %p34, %p35
      %p37 = scmp.ne.s32.totalorder %s26, %s29
      %p38 = scmp.eq.s32.totalorder %s21, 1
      %p39 = por %p37, %p38
      %p40 = scmp.ne.s32.totalorder %s29, %s30
      %p41 = scmp.eq.s32.totalorder %s21, 0
      %p42 = por %p40, %p41
      %p43 = scmp.ne.s32.totalorder %s29, %s30
      %p44 = scmp.eq.s32.totalorder %s22, 1
      %p45 = por %p43, %p44
      %p47 = scmp.ne.s32.totalorder %s30, %s46
      %p48 = scmp.eq.s32.totalorder %s22, 0
      %p49 = por %p47, %p48
      %s51 = sadd.s32 %s50, 1
      %p54 = scmp.eq.s32.totalorder %s16, 1
      %p55 = scmp.ne.s32.totalorder %s50, %s52
      %p56 = scmp.eq.s32.totalorder %s16, 0
      %p57 = por %p55, %p56
      %p58 = scmp.ne.s32.totalorder %s50, %s52
      %p59 = scmp.eq.s32.totalorder %s21, 1
      %p60 = por %p58, %p59
      %p61 = scmp.ne.s32.totalorder %s52, %s53
      %p62 = scmp.eq.s32.totalorder %s21, 0
      %p63 = por %p61, %p62
      %p64 = scmp.ne.s32.totalorder %s52, %s53
      %p65 = scmp.eq.s32.totalorder %s22, 1
      %p66 = por %p64, %p65
      %p68 = scmp.ne.s32.totalorder %s53, %s67
      %p69 = scmp.eq.s32.totalorder %s22, 0
      %p70 = por %p68, %p69
      %s72 = sadd.s32 %s71, 1
      %p75 = scmp.eq.s32.totalorder %s16, 1
      %p76 = scmp.ne.s32.totalorder %s71, %s73
      %p77 = scmp.eq.s32.totalorder %s16, 0
      %p78 = por %p76, %p77
      %p79 = scmp.ne.s32.totalorder %s71, %s73
      %p80 = scmp.eq.s32.totalorder %s21, 1
      %p81 = por %p79, %p80
      %p82 = scmp.ne.s32.totalorder %s73, %s74
      %p83 = scmp.eq.s32.totalorder %s21, 0
      %p84 = por %p82, %p83
      %p85 = scmp.ne.s32.totalorder %s73, %s74
      %p86 = scmp.eq.s32.totalorder %s22, 1
      %p87 = por %p85, %p86
      %p89 = scmp.ne.s32.totalorder %s74, %s88
      %p90 = scmp.eq.s32.totalorder %s22, 0
      %p91 = por %p89, %p90
      %s92 = ssub.s32 %s16, %s23
      %p93 = scmp.eq.s32.totalorder %s92, 0
      %s95 = sadd.s32 %s94, 1
      %s96 = scalar_select %p93, %s94, %s95
      %p99 = pneg %p93
      %p100 = scmp.eq.s32.totalorder %s16, 1
      %p101 = por %p99, %p100
      %p102 = scmp.ne.s32.totalorder %s94, %s97
      %p103 = scmp.eq.s32.totalorder %s16, 0
      %p104 = por %p102, %p103
      %p105 = scmp.ne.s32.totalorder %s94, %s97
      %p106 = scmp.eq.s32.totalorder %s21, 1
      %p107 = por %p105, %p106
      %p108 = scmp.ne.s32.totalorder %s97, %s98
      %p109 = scmp.eq.s32.totalorder %s21, 0
      %p110 = por %p108, %p109
      %p111 = scmp.ne.s32.totalorder %s97, %s98
      %p112 = scmp.eq.s32.totalorder %s22, 1
      %p113 = por %p111, %p112
      %p115 = scmp.ne.s32.totalorder %s98, %s114
      %p116 = scmp.eq.s32.totalorder %s22, 0
      %p117 = por %p115, %p116
      %p118 = scmp.le.s32.totalorder 1, %s16
      %p119 = scmp.lt.s32.totalorder %s16, 3
      %p120 = pnand %p118, %p119
      %p121 = pneg %p120
      // Predicated region
      $region9: #{tpu_custom_call.1} parent=5 // pred_check
        _
      $region10: #{tpu_custom_call.1} parent=5 // pred_check_branch
        %123 = sbr.rel (%p120) target = $region12
      $region11: #{tpu_custom_call.1} parent=5 // pred_region
        %s124 = ssub.s32 %s16, 1
        // Predicated region
        $region13: #{tpu_custom_call.1} parent=11 // pred_check
          %p125 = pneg %p63
        $region14: #{tpu_custom_call.1} parent=11 // pred_check_branch
          %127 = sbr.rel (%p125) target = $region16
        $region15: #{tpu_custom_call.1} parent=11 // pred_region
          %s129 = ssub.s32 256, 256
          %130 = vsyncadd [#allocation6], %s129
          %s132 = sshll.u32 [#allocation5], 4
          %s133 = int_to_ptr.vmem [resolvable:$true] %s132
          %135 = dma.hbm_to_vmem [thread:$0]  %s1, 256, %s133, [#allocation6]
        $region16: #{tpu_custom_call.1} parent=11 // pred_fallthru
          _
        // Predicated region
        $region17: #{tpu_custom_call.1} parent=11 // pred_check
          %p136 = pneg %p84
        $region18: #{tpu_custom_call.1} parent=11 // pred_check_branch
          %138 = sbr.rel (%p136) target = $region20
        $region19: #{tpu_custom_call.1} parent=11 // pred_region
          %s140 = ssub.s32 256, 256
          %141 = vsyncadd [#allocation6], %s140
          %s143 = sshll.u32 [#allocation7], 4
          %s144 = int_to_ptr.vmem [resolvable:$true] %s143
          %146 = dma.hbm_to_vmem [thread:$0]  %s2, 256, %s144, [#allocation6]
        $region20: #{tpu_custom_call.1} parent=11 // pred_fallthru
          _
      $region12: #{tpu_custom_call.1} parent=5 // pred_fallthru
        _
      %p147 = scmp.lt.s32.totalorder %s16, 2
      // Predicated region
      $region21: #{tpu_custom_call.1} parent=5 // pred_check
        %p148 = pneg %p147
      $region22: #{tpu_custom_call.1} parent=5 // pred_check_branch
        %150 = sbr.rel (%p148) target = $region24
      $region23: #{tpu_custom_call.1} parent=5 // pred_region
        // Predicated region
        $region25: #{tpu_custom_call.1} parent=23 // pred_check
          %p151 = pneg %p36
        $region26: #{tpu_custom_call.1} parent=23 // pred_check_branch
          %153 = sbr.rel (%p151) target = $region28
        $region27: #{tpu_custom_call.1} parent=23 // pred_region
          %s154 = sand.u32 %s26, 1
          %s155 = scalar_lea.sflag [#allocation3], %s154
          %s156 = sand.u32 %s26, 1
          %s157 = smul.addr %s156, 8
          %s158 = scalar_lea.vmem [#allocation2], %s157
          %s160 = ssub.s32 128, 128
          %161 = vsyncadd %s155, %s160
          %s162 = smul.addr %s16, 128
          %s163 = scalar_lea.hbm %s0, %s162
          %s165 = sshll.u32 %s158, 4
          %s166 = int_to_ptr.vmem [resolvable:$true] %s165
          %168 = dma.hbm_to_vmem [thread:$0]  %s163, 128, %s166, %s155
        $region28: #{tpu_custom_call.1} parent=23 // pred_fallthru
          _
      $region24: #{tpu_custom_call.1} parent=5 // pred_fallthru
        _
      %p169 = scmp.le.s32.totalorder 1, %s16
      %p170 = scmp.lt.s32.totalorder %s16, 3
      %p171 = pnand %p169, %p170
      %p172 = pneg %p171
      // Predicated region
      $region29: #{tpu_custom_call.1} parent=5 // pred_check
        _
      $region30: #{tpu_custom_call.1} parent=5 // pred_check_branch
        %174 = sbr.rel (%p171) target = $region32
      $region31: #{tpu_custom_call.1} parent=5 // pred_region
        %s175 = ssub.s32 %s16, 1
        %s176 = sand.u32 %s29, 1
        %s177 = scalar_lea.sflag [#allocation3], %s176
        %s178 = sand.u32 %s29, 1
        %s179 = smul.addr %s178, 8
        %s180 = scalar_lea.vmem [#allocation2], %s179
        // Predicated region
        $region33: #{tpu_custom_call.1} parent=31 // pred_check
          %p181 = pneg %p42
        $region34: #{tpu_custom_call.1} parent=31 // pred_check_branch
          %183 = sbr.rel (%p181) target = $region36
        $region35: #{tpu_custom_call.1} parent=31 // pred_region
          %184 = dma.done %s177, 128
        $region36: #{tpu_custom_call.1} parent=31 // pred_fallthru
          _
        // Predicated region
        $region37: #{tpu_custom_call.1} parent=31 // pred_check
          %p185 = pneg %p63
        $region38: #{tpu_custom_call.1} parent=31 // pred_check_branch
          %187 = sbr.rel (%p185) target = $region40
        $region39: #{tpu_custom_call.1} parent=31 // pred_region
          %188 = dma.done [#allocation6], 256
        $region40: #{tpu_custom_call.1} parent=31 // pred_fallthru
          _
        // Predicated region
        $region41: #{tpu_custom_call.1} parent=31 // pred_check
          %p189 = pneg %p84
        $region42: #{tpu_custom_call.1} parent=31 // pred_check_branch
          %191 = sbr.rel (%p189) target = $region44
        $region43: #{tpu_custom_call.1} parent=31 // pred_region
          %192 = dma.done [#allocation6], 256
        $region44: #{tpu_custom_call.1} parent=31 // pred_fallthru
          _
        %s193 = sand.u32 %s29, 1
        %s194 = scalar_lea.sflag [#allocation3], %s193
        %s195 = sand.u32 %s29, 1
        %s196 = smul.addr %s195, 8
        %s197 = scalar_lea.vmem [#allocation2], %s196
        %p198 = pneg %p42
        %p199 = pneg %p39
        %p200 = pneg %p63
        %p201 = pneg %p60
        %p202 = pneg %p84
        %p203 = pneg %p81
        %p204 = pneg %p110
        %p205 = pneg %p107
        %s206 = sand.u32 %s97, 1
        %s207 = scalar_lea.sflag [#allocation4], %s206
        %s208 = sand.u32 %s97, 1
        %s209 = smul.addr %s208, 128
        %s210 = scalar_lea.vmem [#allocation8], %s209
        %v211 = vld [vmem:[%s180] sm:$0xff]
        %213 = vrot.lane.b32.xlu0 %v211, 16
        %v214 = vpop.permute.xlu0 %213
        %216 = vrot.lane.b32.xlu0 %v211, 32
        %v217 = vpop.permute.xlu0 %216
        %219 = vrot.lane.b32.xlu0 %v211, 48
        %v220 = vpop.permute.xlu0 %219
        %222 = vrot.lane.b32.xlu0 %v211, 64
        %v223 = vpop.permute.xlu0 %222
        %225 = vrot.lane.b32.xlu0 %v211, 80
        %v226 = vpop.permute.xlu0 %225
        %228 = vrot.lane.b32.xlu0 %v211, 96
        %v229 = vpop.permute.xlu0 %228
        %231 = vrot.lane.b32.xlu0 %v211, 112
        %v232 = vpop.permute.xlu0 %231
        %vm234 = vcmask 130048
        %v235 = vsel %vm234, %v211, %v214
        %vm236 = vcmask 261120
        %v237 = vsel %vm236, %v235, %v217
        %vm238 = vcmask 392192
        %v239 = vsel %vm238, %v237, %v220
        %vm240 = vcmask 523264
        %v241 = vsel %vm240, %v239, %v223
        %vm242 = vcmask 654336
        %v243 = vsel %vm242, %v241, %v226
        %vm244 = vcmask 785408
        %v245 = vsel %vm244, %v243, %v229
        %vm246 = vcmask 916480
        %v247 = vsel %vm246, %v245, %v232
        %v248 = vld [vmem:[#allocation5] sm:$0xff]
        %v249 = vld [vmem:[#allocation5 + $0x8] sm:$0xff]
        %v252 = vlaneseq
        %v253 = vshrl.u32 %v252, 7
        %v254 = vsub.s32 0, %v253
        %v255 = vrot.slane %v248, %v254
        %v256 = vlaneseq
        %v257 = vshrl.u32 %v256, 7
        %v258 = vsub.s32 1, %v257
        %v259 = vrot.slane %v248, %v258
        %v260 = vlaneseq
        %v261 = vshrl.u32 %v260, 7
        %v262 = vsub.s32 2, %v261
        %v263 = vrot.slane %v248, %v262
        %v264 = vlaneseq
        %v265 = vshrl.u32 %v264, 7
        %v266 = vsub.s32 3, %v265
        %v267 = vrot.slane %v248, %v266
        %v268 = vlaneseq
        %v269 = vshrl.u32 %v268, 7
        %v270 = vsub.s32 4, %v269
        %v271 = vrot.slane %v248, %v270
        %v272 = vlaneseq
        %v273 = vshrl.u32 %v272, 7
        %v274 = vsub.s32 5, %v273
        %v275 = vrot.slane %v248, %v274
        %v276 = vlaneseq
        %v277 = vshrl.u32 %v276, 7
        %v278 = vsub.s32 6, %v277
        %v279 = vrot.slane %v248, %v278
        %v280 = vlaneseq
        %v281 = vshrl.u32 %v280, 7
        %v282 = vsub.s32 7, %v281
        %v283 = vrot.slane %v248, %v282
        %v284 = vlaneseq
        %v285 = vshrl.u32 %v284, 7
        %v286 = vsub.s32 0, %v285
        %v287 = vrot.slane %v249, %v286
        %v288 = vlaneseq
        %v289 = vshrl.u32 %v288, 7
        %v290 = vsub.s32 1, %v289
        %v291 = vrot.slane %v249, %v290
        %v292 = vlaneseq
        %v293 = vshrl.u32 %v292, 7
        %v294 = vsub.s32 2, %v293
        %v295 = vrot.slane %v249, %v294
        %v296 = vlaneseq
        %v297 = vshrl.u32 %v296, 7
        %v298 = vsub.s32 3, %v297
        %v299 = vrot.slane %v249, %v298
        %v300 = vlaneseq
        %v301 = vshrl.u32 %v300, 7
        %v302 = vsub.s32 4, %v301
        %v303 = vrot.slane %v249, %v302
        %v304 = vlaneseq
        %v305 = vshrl.u32 %v304, 7
        %v306 = vsub.s32 5, %v305
        %v307 = vrot.slane %v249, %v306
        %v308 = vlaneseq
        %v309 = vshrl.u32 %v308, 7
        %v310 = vsub.s32 6, %v309
        %v311 = vrot.slane %v249, %v310
        %v312 = vlaneseq
        %v313 = vshrl.u32 %v312, 7
        %v314 = vsub.s32 7, %v313
        %v315 = vrot.slane %v249, %v314
        %v332 = vmul.f32 %v255, %v247
        %v333 = vmul.f32 %v259, %v247
        %v334 = vmul.f32 %v263, %v247
        %v335 = vmul.f32 %v267, %v247
        %v336 = vmul.f32 %v271, %v247
        %v337 = vmul.f32 %v275, %v247
        %v338 = vmul.f32 %v279, %v247
        %v339 = vmul.f32 %v283, %v247
        %v340 = vmul.f32 %v287, %v247
        %v341 = vmul.f32 %v291, %v247
        %v342 = vmul.f32 %v295, %v247
        %v343 = vmul.f32 %v299, %v247
        %v344 = vmul.f32 %v303, %v247
        %v345 = vmul.f32 %v307, %v247
        %v346 = vmul.f32 %v311, %v247
        %v347 = vmul.f32 %v315, %v247
        %v348 = vld [vmem:[#allocation7] sm:$0xff]
        %v349 = vld [vmem:[#allocation7 + $0x8] sm:$0xff]
        %v352 = vlaneseq
        %v353 = vshrl.u32 %v352, 7
        %v354 = vsub.s32 0, %v353
        %v355 = vrot.slane %v348, %v354
        %v356 = vlaneseq
        %v357 = vshrl.u32 %v356, 7
        %v358 = vsub.s32 1, %v357
        %v359 = vrot.slane %v348, %v358
        %v360 = vlaneseq
        %v361 = vshrl.u32 %v360, 7
        %v362 = vsub.s32 2, %v361
        %v363 = vrot.slane %v348, %v362
        %v364 = vlaneseq
        %v365 = vshrl.u32 %v364, 7
        %v366 = vsub.s32 3, %v365
        %v367 = vrot.slane %v348, %v366
        %v368 = vlaneseq
        %v369 = vshrl.u32 %v368, 7
        %v370 = vsub.s32 4, %v369
        %v371 = vrot.slane %v348, %v370
        %v372 = vlaneseq
        %v373 = vshrl.u32 %v372, 7
        %v374 = vsub.s32 5, %v373
        %v375 = vrot.slane %v348, %v374
        %v376 = vlaneseq
        %v377 = vshrl.u32 %v376, 7
        %v378 = vsub.s32 6, %v377
        %v379 = vrot.slane %v348, %v378
        %v380 = vlaneseq
        %v381 = vshrl.u32 %v380, 7
        %v382 = vsub.s32 7, %v381
        %v383 = vrot.slane %v348, %v382
        %v384 = vlaneseq
        %v385 = vshrl.u32 %v384, 7
        %v386 = vsub.s32 0, %v385
        %v387 = vrot.slane %v349, %v386
        %v388 = vlaneseq
        %v389 = vshrl.u32 %v388, 7
        %v390 = vsub.s32 1, %v389
        %v391 = vrot.slane %v349, %v390
        %v392 = vlaneseq
        %v393 = vshrl.u32 %v392, 7
        %v394 = vsub.s32 2, %v393
        %v395 = vrot.slane %v349, %v394
        %v396 = vlaneseq
        %v397 = vshrl.u32 %v396, 7
        %v398 = vsub.s32 3, %v397
        %v399 = vrot.slane %v349, %v398
        %v400 = vlaneseq
        %v401 = vshrl.u32 %v400, 7
        %v402 = vsub.s32 4, %v401
        %v403 = vrot.slane %v349, %v402
        %v404 = vlaneseq
        %v405 = vshrl.u32 %v404, 7
        %v406 = vsub.s32 5, %v405
        %v407 = vrot.slane %v349, %v406
        %v408 = vlaneseq
        %v409 = vshrl.u32 %v408, 7
        %v410 = vsub.s32 6, %v409
        %v411 = vrot.slane %v349, %v410
        %v412 = vlaneseq
        %v413 = vshrl.u32 %v412, 7
        %v414 = vsub.s32 7, %v413
        %v415 = vrot.slane %v349, %v414
        %v432 = vsub.f32 %v332, %v355
        %v433 = vsub.f32 %v333, %v359
        %v434 = vsub.f32 %v334, %v363
        %v435 = vsub.f32 %v335, %v367
        %v436 = vsub.f32 %v336, %v371
        %v437 = vsub.f32 %v337, %v375
        %v438 = vsub.f32 %v338, %v379
        %v439 = vsub.f32 %v339, %v383
        %v440 = vsub.f32 %v340, %v387
        %v441 = vsub.f32 %v341, %v391
        %v442 = vsub.f32 %v342, %v395
        %v443 = vsub.f32 %v343, %v399
        %v444 = vsub.f32 %v344, %v403
        %v445 = vsub.f32 %v345, %v407
        %v446 = vsub.f32 %v346, %v411
        %v447 = vsub.f32 %v347, %v415
        %v448 = vand.u32 2147483647, %v432
        %vm449 = vcmp.le.f32.partialorder %v448, 0.7853982
        %vm450 = vcmp.lt.s32.totalorder %v432, 0
        %v451 = vand.u32 %v432, 2139095040
        %v452 = vshrl.u32 %v451, 23
        %v453 = vsub.s32 %v452, 127
        %v454 = vand.u32 2147483647, %v432
        %v455 = vand.u32 %v454, 8388607
        %v456 = vor.u32 %v455, 8388608
        %v457 = vsub.s32 0, %v456
        %v458 = vadd.s32 %v453, 1
        %vm459 = vcmp.gt.s32.totalorder %v458, 0
        %v460 = vsel %vm459, %v458, 0
        %v461 = vshrl.u32 %v460, 5
        %v462 = vand.u32 %v460, 31
        %v463 = vsub.s32 32, %v462
        %v464 = vshrl.u32 683565275, %v463
        %v465 = vshll.u32 683565275, %v462
        %v466 = vshrl.u32 2475754826, %v463
        %v467 = vor.u32 %v465, %v466
        %v468 = vshll.u32 2475754826, %v462
        %v469 = vshrl.u32 2131351028, %v463
        %v470 = vor.u32 %v468, %v469
        %v471 = vshll.u32 2131351028, %v462
        %v472 = vshrl.u32 2102212464, %v463
        %v473 = vor.u32 %v471, %v472
        %v474 = vshll.u32 2102212464, %v462
        %v475 = vshrl.u32 920167782, %v463
        %v476 = vor.u32 %v474, %v475
        %v477 = vshll.u32 920167782, %v462
        %v478 = vshrl.u32 1326507024, %v463
        %v479 = vor.u32 %v477, %v478
        %vm480 = vcmp.lt.s32.totalorder %v461, 1
        %vm481 = vcmp.lt.s32.totalorder %v461, 2
        %vm482 = vcmp.lt.s32.totalorder %v461, 3
        %vm483 = vcmp.lt.s32.totalorder %v461, 4
        %v484 = vsel %vm480, %v464, %v467
        %v485 = vsel %vm483, %v473, 2102212464
        %v486 = vsel %vm482, %v470, %v485
        %v487 = vsel %vm481, %v484, %v486
        %v488 = vsel %vm480, %v467, %v470
        %v489 = vsel %vm483, %v476, 920167782
        %v490 = vsel %vm482, %v473, %v489
        %v491 = vsel %vm481, %v488, %v490
        %v492 = vsel %vm480, %v470, %v473
        %v493 = vsel %vm483, %v479, 1326507024
        %v494 = vsel %vm482, %v476, %v493
        %v495 = vsel %vm481, %v492, %v494
        %v496 = vshll.u32 %v456, 8
        %v497 = vmul.u32.u64.compose %v496, %v495
        %v498 = vextract.low.u32 %v497
        %v499 = vextract.high.u32 %v497
        %v500 = vmul.u32.u64.compose %v496, %v491
        %v501 = vextract.low.u32 %v500
        %v502 = vextract.high.u32 %v500
        %v503 = vmul.u32 %v496, %v487
        %v504 = vadd.s32 %v499, %v501
        %vm505 = vc.u32 %v499, %v501
        %v506 = vadd.s32 %v502, 1
        %v507 = vsel %vm505, %v506, %v502
        %v508 = vadd.s32 %v503, %v507
        %v509 = vadd.s32 %v508, 536870912
        %v510 = vshrl.u32 %v509, 30
        %v511 = vshll.u32 %v510, 30
        %v512 = vsub.s32 %v508, %v511
        %vm513 = vcmp.lt.s32.totalorder %v512, 0
        %v514 = vsub.s32 0, %v512
        %v515 = vsel %vm513, %v514, %v512
        %v516 = vclz %v515
        %v517 = vsub.s32 %v516, 2
        %vm518 = vcmp.gt.s32.totalorder 0, %v517
        %v519 = vsel %vm518, 0, %v517
        %v520 = vsub.s32 32, %v519
        %v521 = vshll.u32 %v512, %v519
        %v522 = vshrl.u32 %v504, %v520
        %v523 = vor.u32 %v521, %v522
        %v524 = vsub.s32 4294967266, %v519
        %v525 = vadd.s32 %v524, 127
        %v526 = vshll.u32 %v525, 23
        %v527 = vor.u32 4788187, %v526
        %v528 = vand.u32 2147483647, %v527
        %v530 = vcvt.s32.f32 %v523
        %v531 = vmul.f32 %v530, %v528
        %v532 = vxor.u32 %v531, 2147483648
        %v533 = vsel %vm450, %v532, %v531
        %v534 = vsub.s32 4, %v510
        %v535 = vsel %vm450, %v534, %v510
        %v536 = vsel %vm449, %v432, %v533
        %v537 = vsel %vm449, 0, %v535
        %v538 = vcosq.f32.pop %v536
        %v539 = vsinq.f32.pop %v536
        %vm540 = vweird.f32 %v432
        %v541 = vand.u32 %v537, 3
        %vm542 = vcmp.lt.s32.totalorder %v541, 2
        %vm543 = vcmp.eq.s32.totalorder %v541, 0
        %v544 = vxor.u32 %v539, 2147483648
        %v545 = vsel %vm543, %v538, %v544
        %vm546 = vcmp.eq.s32.totalorder %v541, 2
        %v547 = vxor.u32 %v538, 2147483648
        %v548 = vsel %vm546, %v547, %v539
        %v549 = vsel %vm542, %v545, %v548
        %v550 = vsel %vm540, nan, %v549
        %v551 = vand.u32 2147483647, %v433
        %vm552 = vcmp.le.f32.partialorder %v551, 0.7853982
        %vm553 = vcmp.lt.s32.totalorder %v433, 0
        %v554 = vand.u32 %v433, 2139095040
        %v555 = vshrl.u32 %v554, 23
        %v556 = vsub.s32 %v555, 127
        %v557 = vand.u32 2147483647, %v433
        %v558 = vand.u32 %v557, 8388607
        %v559 = vor.u32 %v558, 8388608
        %v560 = vsub.s32 0, %v559
        %v561 = vadd.s32 %v556, 1
        %vm562 = vcmp.gt.s32.totalorder %v561, 0
        %v563 = vsel %vm562, %v561, 0
        %v564 = vshrl.u32 %v563, 5
        %v565 = vand.u32 %v563, 31
        %v566 = vsub.s32 32, %v565
        %v567 = vshrl.u32 683565275, %v566
        %v568 = vshll.u32 683565275, %v565
        %v569 = vshrl.u32 2475754826, %v566
        %v570 = vor.u32 %v568, %v569
        %v571 = vshll.u32 2475754826, %v565
        %v572 = vshrl.u32 2131351028, %v566
        %v573 = vor.u32 %v571, %v572
        %v574 = vshll.u32 2131351028, %v565
        %v575 = vshrl.u32 2102212464, %v566
        %v576 = vor.u32 %v574, %v575
        %v577 = vshll.u32 2102212464, %v565
        %v578 = vshrl.u32 920167782, %v566
        %v579 = vor.u32 %v577, %v578
        %v580 = vshll.u32 920167782, %v565
        %v581 = vshrl.u32 1326507024, %v566
        %v582 = vor.u32 %v580, %v581
        %vm583 = vcmp.lt.s32.totalorder %v564, 1
        %vm584 = vcmp.lt.s32.totalorder %v564, 2
        %vm585 = vcmp.lt.s32.totalorder %v564, 3
        %vm586 = vcmp.lt.s32.totalorder %v564, 4
        %v587 = vsel %vm583, %v567, %v570
        %v588 = vsel %vm586, %v576, 2102212464
        %v589 = vsel %vm585, %v573, %v588
        %v590 = vsel %vm584, %v587, %v589
        %v591 = vsel %vm583, %v570, %v573
        %v592 = vsel %vm586, %v579, 920167782
        %v593 = vsel %vm585, %v576, %v592
        %v594 = vsel %vm584, %v591, %v593
        %v595 = vsel %vm583, %v573, %v576
        %v596 = vsel %vm586, %v582, 1326507024
        %v597 = vsel %vm585, %v579, %v596
        %v598 = vsel %vm584, %v595, %v597
        %v599 = vshll.u32 %v559, 8
        %v600 = vmul.u32.u64.compose %v599, %v598
        %v601 = vextract.low.u32 %v600
        %v602 = vextract.high.u32 %v600
        %v603 = vmul.u32.u64.compose %v599, %v594
        %v604 = vextract.low.u32 %v603
        %v605 = vextract.high.u32 %v603
        %v606 = vmul.u32 %v599, %v590
        %v607 = vadd.s32 %v602, %v604
        %vm608 = vc.u32 %v602, %v604
        %v609 = vadd.s32 %v605, 1
        %v610 = vsel %vm608, %v609, %v605
        %v611 = vadd.s32 %v606, %v610
        %v612 = vadd.s32 %v611, 536870912
        %v613 = vshrl.u32 %v612, 30
        %v614 = vshll.u32 %v613, 30
        %v615 = vsub.s32 %v611, %v614
        %vm616 = vcmp.lt.s32.totalorder %v615, 0
        %v617 = vsub.s32 0, %v615
        %v618 = vsel %vm616, %v617, %v615
        %v619 = vclz %v618
        %v620 = vsub.s32 %v619, 2
        %vm621 = vcmp.gt.s32.totalorder 0, %v620
        %v622 = vsel %vm621, 0, %v620
        %v623 = vsub.s32 32, %v622
        %v624 = vshll.u32 %v615, %v622
        %v625 = vshrl.u32 %v607, %v623
        %v626 = vor.u32 %v624, %v625
        %v627 = vsub.s32 4294967266, %v622
        %v628 = vadd.s32 %v627, 127
        %v629 = vshll.u32 %v628, 23
        %v630 = vor.u32 4788187, %v629
        %v631 = vand.u32 2147483647, %v630
        %v633 = vcvt.s32.f32 %v626
        %v634 = vmul.f32 %v633, %v631
        %v635 = vxor.u32 %v634, 2147483648
        %v636 = vsel %vm553, %v635, %v634
        %v637 = vsub.s32 4, %v613
        %v638 = vsel %vm553, %v637, %v613
        %v639 = vsel %vm552, %v433, %v636
        %v640 = vsel %vm552, 0, %v638
        %v641 = vcosq.f32.pop %v639
        %v642 = vsinq.f32.pop %v639
        %vm643 = vweird.f32 %v433
        %v644 = vand.u32 %v640, 3
        %vm645 = vcmp.lt.s32.totalorder %v644, 2
        %vm646 = vcmp.eq.s32.totalorder %v644, 0
        %v647 = vxor.u32 %v642, 2147483648
        %v648 = vsel %vm646, %v641, %v647
        %vm649 = vcmp.eq.s32.totalorder %v644, 2
        %v650 = vxor.u32 %v641, 2147483648
        %v651 = vsel %vm649, %v650, %v642
        %v652 = vsel %vm645, %v648, %v651
        %v653 = vsel %vm643, nan, %v652
        %v654 = vand.u32 2147483647, %v434
        %vm655 = vcmp.le.f32.partialorder %v654, 0.7853982
        %vm656 = vcmp.lt.s32.totalorder %v434, 0
        %v657 = vand.u32 %v434, 2139095040
        %v658 = vshrl.u32 %v657, 23
        %v659 = vsub.s32 %v658, 127
        %v660 = vand.u32 2147483647, %v434
        %v661 = vand.u32 %v660, 8388607
        %v662 = vor.u32 %v661, 8388608
        %v663 = vsub.s32 0, %v662
        %v664 = vadd.s32 %v659, 1
        %vm665 = vcmp.gt.s32.totalorder %v664, 0
        %v666 = vsel %vm665, %v664, 0
        %v667 = vshrl.u32 %v666, 5
        %v668 = vand.u32 %v666, 31
        %v669 = vsub.s32 32, %v668
        %v670 = vshrl.u32 683565275, %v669
        %v671 = vshll.u32 683565275, %v668
        %v672 = vshrl.u32 2475754826, %v669
        %v673 = vor.u32 %v671, %v672
        %v674 = vshll.u32 2475754826, %v668
        %v675 = vshrl.u32 2131351028, %v669
        %v676 = vor.u32 %v674, %v675
        %v677 = vshll.u32 2131351028, %v668
        %v678 = vshrl.u32 2102212464, %v669
        %v679 = vor.u32 %v677, %v678
        %v680 = vshll.u32 2102212464, %v668
        %v681 = vshrl.u32 920167782, %v669
        %v682 = vor.u32 %v680, %v681
        %v683 = vshll.u32 920167782, %v668
        %v684 = vshrl.u32 1326507024, %v669
        %v685 = vor.u32 %v683, %v684
        %vm686 = vcmp.lt.s32.totalorder %v667, 1
        %vm687 = vcmp.lt.s32.totalorder %v667, 2
        %vm688 = vcmp.lt.s32.totalorder %v667, 3
        %vm689 = vcmp.lt.s32.totalorder %v667, 4
        %v690 = vsel %vm686, %v670, %v673
        %v691 = vsel %vm689, %v679, 2102212464
        %v692 = vsel %vm688, %v676, %v691
        %v693 = vsel %vm687, %v690, %v692
        %v694 = vsel %vm686, %v673, %v676
        %v695 = vsel %vm689, %v682, 920167782
        %v696 = vsel %vm688, %v679, %v695
        %v697 = vsel %vm687, %v694, %v696
        %v698 = vsel %vm686, %v676, %v679
        %v699 = vsel %vm689, %v685, 1326507024
        %v700 = vsel %vm688, %v682, %v699
        %v701 = vsel %vm687, %v698, %v700
        %v702 = vshll.u32 %v662, 8
        %v703 = vmul.u32.u64.compose %v702, %v701
        %v704 = vextract.low.u32 %v703
        %v705 = vextract.high.u32 %v703
        %v706 = vmul.u32.u64.compose %v702, %v697
        %v707 = vextract.low.u32 %v706
        %v708 = vextract.high.u32 %v706
        %v709 = vmul.u32 %v702, %v693
        %v710 = vadd.s32 %v705, %v707
        %vm711 = vc.u32 %v705, %v707
        %v712 = vadd.s32 %v708, 1
        %v713 = vsel %vm711, %v712, %v708
        %v714 = vadd.s32 %v709, %v713
        %v715 = vadd.s32 %v714, 536870912
        %v716 = vshrl.u32 %v715, 30
        %v717 = vshll.u32 %v716, 30
        %v718 = vsub.s32 %v714, %v717
        %vm719 = vcmp.lt.s32.totalorder %v718, 0
        %v720 = vsub.s32 0, %v718
        %v721 = vsel %vm719, %v720, %v718
        %v722 = vclz %v721
        %v723 = vsub.s32 %v722, 2
        %vm724 = vcmp.gt.s32.totalorder 0, %v723
        %v725 = vsel %vm724, 0, %v723
        %v726 = vsub.s32 32, %v725
        %v727 = vshll.u32 %v718, %v725
        %v728 = vshrl.u32 %v710, %v726
        %v729 = vor.u32 %v727, %v728
        %v730 = vsub.s32 4294967266, %v725
        %v731 = vadd.s32 %v730, 127
        %v732 = vshll.u32 %v731, 23
        %v733 = vor.u32 4788187, %v732
        %v734 = vand.u32 2147483647, %v733
        %v736 = vcvt.s32.f32 %v729
        %v737 = vmul.f32 %v736, %v734
        %v738 = vxor.u32 %v737, 2147483648
        %v739 = vsel %vm656, %v738, %v737
        %v740 = vsub.s32 4, %v716
        %v741 = vsel %vm656, %v740, %v716
        %v742 = vsel %vm655, %v434, %v739
        %v743 = vsel %vm655, 0, %v741
        %v744 = vcosq.f32.pop %v742
        %v745 = vsinq.f32.pop %v742
        %vm746 = vweird.f32 %v434
        %v747 = vand.u32 %v743, 3
        %vm748 = vcmp.lt.s32.totalorder %v747, 2
        %vm749 = vcmp.eq.s32.totalorder %v747, 0
        %v750 = vxor.u32 %v745, 2147483648
        %v751 = vsel %vm749, %v744, %v750
        %vm752 = vcmp.eq.s32.totalorder %v747, 2
        %v753 = vxor.u32 %v744, 2147483648
        %v754 = vsel %vm752, %v753, %v745
        %v755 = vsel %vm748, %v751, %v754
        %v756 = vsel %vm746, nan, %v755
        %v757 = vand.u32 2147483647, %v435
        %vm758 = vcmp.le.f32.partialorder %v757, 0.7853982
        %vm759 = vcmp.lt.s32.totalorder %v435, 0
        %v760 = vand.u32 %v435, 2139095040
        %v761 = vshrl.u32 %v760, 23
        %v762 = vsub.s32 %v761, 127
        %v763 = vand.u32 2147483647, %v435
        %v764 = vand.u32 %v763, 8388607
        %v765 = vor.u32 %v764, 8388608
        %v766 = vsub.s32 0, %v765
        %v767 = vadd.s32 %v762, 1
        %vm768 = vcmp.gt.s32.totalorder %v767, 0
        %v769 = vsel %vm768, %v767, 0
        %v770 = vshrl.u32 %v769, 5
        %v771 = vand.u32 %v769, 31
        %v772 = vsub.s32 32, %v771
        %v773 = vshrl.u32 683565275, %v772
        %v774 = vshll.u32 683565275, %v771
        %v775 = vshrl.u32 2475754826, %v772
        %v776 = vor.u32 %v774, %v775
        %v777 = vshll.u32 2475754826, %v771
        %v778 = vshrl.u32 2131351028, %v772
        %v779 = vor.u32 %v777, %v778
        %v780 = vshll.u32 2131351028, %v771
        %v781 = vshrl.u32 2102212464, %v772
        %v782 = vor.u32 %v780, %v781
        %v783 = vshll.u32 2102212464, %v771
        %v784 = vshrl.u32 920167782, %v772
        %v785 = vor.u32 %v783, %v784
        %v786 = vshll.u32 920167782, %v771
        %v787 = vshrl.u32 1326507024, %v772
        %v788 = vor.u32 %v786, %v787
        %vm789 = vcmp.lt.s32.totalorder %v770, 1
        %vm790 = vcmp.lt.s32.totalorder %v770, 2
        %vm791 = vcmp.lt.s32.totalorder %v770, 3
        %vm792 = vcmp.lt.s32.totalorder %v770, 4
        %v793 = vsel %vm789, %v773, %v776
        %v794 = vsel %vm792, %v782, 2102212464
        %v795 = vsel %vm791, %v779, %v794
        %v796 = vsel %vm790, %v793, %v795
        %v797 = vsel %vm789, %v776, %v779
        %v798 = vsel %vm792, %v785, 920167782
        %v799 = vsel %vm791, %v782, %v798
        %v800 = vsel %vm790, %v797, %v799
        %v801 = vsel %vm789, %v779, %v782
        %v802 = vsel %vm792, %v788, 1326507024
        %v803 = vsel %vm791, %v785, %v802
        %v804 = vsel %vm790, %v801, %v803
        %v805 = vshll.u32 %v765, 8
        %v806 = vmul.u32.u64.compose %v805, %v804
        %v807 = vextract.low.u32 %v806
        %v808 = vextract.high.u32 %v806
        %v809 = vmul.u32.u64.compose %v805, %v800
        %v810 = vextract.low.u32 %v809
        %v811 = vextract.high.u32 %v809
        %v812 = vmul.u32 %v805, %v796
        %v813 = vadd.s32 %v808, %v810
        %vm814 = vc.u32 %v808, %v810
        %v815 = vadd.s32 %v811, 1
        %v816 = vsel %vm814, %v815, %v811
        %v817 = vadd.s32 %v812, %v816
        %v818 = vadd.s32 %v817, 536870912
        %v819 = vshrl.u32 %v818, 30
        %v820 = vshll.u32 %v819, 30
        %v821 = vsub.s32 %v817, %v820
        %vm822 = vcmp.lt.s32.totalorder %v821, 0
        %v823 = vsub.s32 0, %v821
        %v824 = vsel %vm822, %v823, %v821
        %v825 = vclz %v824
        %v826 = vsub.s32 %v825, 2
        %vm827 = vcmp.gt.s32.totalorder 0, %v826
        %v828 = vsel %vm827, 0, %v826
        %v829 = vsub.s32 32, %v828
        %v830 = vshll.u32 %v821, %v828
        %v831 = vshrl.u32 %v813, %v829
        %v832 = vor.u32 %v830, %v831
        %v833 = vsub.s32 4294967266, %v828
        %v834 = vadd.s32 %v833, 127
        %v835 = vshll.u32 %v834, 23
        %v836 = vor.u32 4788187, %v835
        %v837 = vand.u32 2147483647, %v836
        %v839 = vcvt.s32.f32 %v832
        %v840 = vmul.f32 %v839, %v837
        %v841 = vxor.u32 %v840, 2147483648
        %v842 = vsel %vm759, %v841, %v840
        %v843 = vsub.s32 4, %v819
        %v844 = vsel %vm759, %v843, %v819
        %v845 = vsel %vm758, %v435, %v842
        %v846 = vsel %vm758, 0, %v844
        %v847 = vcosq.f32.pop %v845
        %v848 = vsinq.f32.pop %v845
        %vm849 = vweird.f32 %v435
        %v850 = vand.u32 %v846, 3
        %vm851 = vcmp.lt.s32.totalorder %v850, 2
        %vm852 = vcmp.eq.s32.totalorder %v850, 0
        %v853 = vxor.u32 %v848, 2147483648
        %v854 = vsel %vm852, %v847, %v853
        %vm855 = vcmp.eq.s32.totalorder %v850, 2
        %v856 = vxor.u32 %v847, 2147483648
        %v857 = vsel %vm855, %v856, %v848
        %v858 = vsel %vm851, %v854, %v857
        %v859 = vsel %vm849, nan, %v858
        %v860 = vand.u32 2147483647, %v436
        %vm861 = vcmp.le.f32.partialorder %v860, 0.7853982
        %vm862 = vcmp.lt.s32.totalorder %v436, 0
        %v863 = vand.u32 %v436, 2139095040
        %v864 = vshrl.u32 %v863, 23
        %v865 = vsub.s32 %v864, 127
        %v866 = vand.u32 2147483647, %v436
        %v867 = vand.u32 %v866, 8388607
        %v868 = vor.u32 %v867, 8388608
        %v869 = vsub.s32 0, %v868
        %v870 = vadd.s32 %v865, 1
        %vm871 = vcmp.gt.s32.totalorder %v870, 0
        %v872 = vsel %vm871, %v870, 0
        %v873 = vshrl.u32 %v872, 5
        %v874 = vand.u32 %v872, 31
        %v875 = vsub.s32 32, %v874
        %v876 = vshrl.u32 683565275, %v875
        %v877 = vshll.u32 683565275, %v874
        %v878 = vshrl.u32 2475754826, %v875
        %v879 = vor.u32 %v877, %v878
        %v880 = vshll.u32 2475754826, %v874
        %v881 = vshrl.u32 2131351028, %v875
        %v882 = vor.u32 %v880, %v881
        %v883 = vshll.u32 2131351028, %v874
        %v884 = vshrl.u32 2102212464, %v875
        %v885 = vor.u32 %v883, %v884
        %v886 = vshll.u32 2102212464, %v874
        %v887 = vshrl.u32 920167782, %v875
        %v888 = vor.u32 %v886, %v887
        %v889 = vshll.u32 920167782, %v874
        %v890 = vshrl.u32 1326507024, %v875
        %v891 = vor.u32 %v889, %v890
        %vm892 = vcmp.lt.s32.totalorder %v873, 1
        %vm893 = vcmp.lt.s32.totalorder %v873, 2
        %vm894 = vcmp.lt.s32.totalorder %v873, 3
        %vm895 = vcmp.lt.s32.totalorder %v873, 4
        %v896 = vsel %vm892, %v876, %v879
        %v897 = vsel %vm895, %v885, 2102212464
        %v898 = vsel %vm894, %v882, %v897
        %v899 = vsel %vm893, %v896, %v898
        %v900 = vsel %vm892, %v879, %v882
        %v901 = vsel %vm895, %v888, 920167782
        %v902 = vsel %vm894, %v885, %v901
        %v903 = vsel %vm893, %v900, %v902
        %v904 = vsel %vm892, %v882, %v885
        %v905 = vsel %vm895, %v891, 1326507024
        %v906 = vsel %vm894, %v888, %v905
        %v907 = vsel %vm893, %v904, %v906
        %v908 = vshll.u32 %v868, 8
        %v909 = vmul.u32.u64.compose %v908, %v907
        %v910 = vextract.low.u32 %v909
        %v911 = vextract.high.u32 %v909
        %v912 = vmul.u32.u64.compose %v908, %v903
        %v913 = vextract.low.u32 %v912
        %v914 = vextract.high.u32 %v912
        %v915 = vmul.u32 %v908, %v899
        %v916 = vadd.s32 %v911, %v913
        %vm917 = vc.u32 %v911, %v913
        %v918 = vadd.s32 %v914, 1
        %v919 = vsel %vm917, %v918, %v914
        %v920 = vadd.s32 %v915, %v919
        %v921 = vadd.s32 %v920, 536870912
        %v922 = vshrl.u32 %v921, 30
        %v923 = vshll.u32 %v922, 30
        %v924 = vsub.s32 %v920, %v923
        %vm925 = vcmp.lt.s32.totalorder %v924, 0
        %v926 = vsub.s32 0, %v924
        %v927 = vsel %vm925, %v926, %v924
        %v928 = vclz %v927
        %v929 = vsub.s32 %v928, 2
        %vm930 = vcmp.gt.s32.totalorder 0, %v929
        %v931 = vsel %vm930, 0, %v929
        %v932 = vsub.s32 32, %v931
        %v933 = vshll.u32 %v924, %v931
        %v934 = vshrl.u32 %v916, %v932
        %v935 = vor.u32 %v933, %v934
        %v936 = vsub.s32 4294967266, %v931
        %v937 = vadd.s32 %v936, 127
        %v938 = vshll.u32 %v937, 23
        %v939 = vor.u32 4788187, %v938
        %v940 = vand.u32 2147483647, %v939
        %v942 = vcvt.s32.f32 %v935
        %v943 = vmul.f32 %v942, %v940
        %v944 = vxor.u32 %v943, 2147483648
        %v945 = vsel %vm862, %v944, %v943
        %v946 = vsub.s32 4, %v922
        %v947 = vsel %vm862, %v946, %v922
        %v948 = vsel %vm861, %v436, %v945
        %v949 = vsel %vm861, 0, %v947
        %v950 = vcosq.f32.pop %v948
        %v951 = vsinq.f32.pop %v948
        %vm952 = vweird.f32 %v436
        %v953 = vand.u32 %v949, 3
        %vm954 = vcmp.lt.s32.totalorder %v953, 2
        %vm955 = vcmp.eq.s32.totalorder %v953, 0
        %v956 = vxor.u32 %v951, 2147483648
        %v957 = vsel %vm955, %v950, %v956
        %vm958 = vcmp.eq.s32.totalorder %v953, 2
        %v959 = vxor.u32 %v950, 2147483648
        %v960 = vsel %vm958, %v959, %v951
        %v961 = vsel %vm954, %v957, %v960
        %v962 = vsel %vm952, nan, %v961
        %v963 = vand.u32 2147483647, %v437
        %vm964 = vcmp.le.f32.partialorder %v963, 0.7853982
        %vm965 = vcmp.lt.s32.totalorder %v437, 0
        %v966 = vand.u32 %v437, 2139095040
        %v967 = vshrl.u32 %v966, 23
        %v968 = vsub.s32 %v967, 127
        %v969 = vand.u32 2147483647, %v437
        %v970 = vand.u32 %v969, 8388607
        %v971 = vor.u32 %v970, 8388608
        %v972 = vsub.s32 0, %v971
        %v973 = vadd.s32 %v968, 1
        %vm974 = vcmp.gt.s32.totalorder %v973, 0
        %v975 = vsel %vm974, %v973, 0
        %v976 = vshrl.u32 %v975, 5
        %v977 = vand.u32 %v975, 31
        %v978 = vsub.s32 32, %v977
        %v979 = vshrl.u32 683565275, %v978
        %v980 = vshll.u32 683565275, %v977
        %v981 = vshrl.u32 2475754826, %v978
        %v982 = vor.u32 %v980, %v981
        %v983 = vshll.u32 2475754826, %v977
        %v984 = vshrl.u32 2131351028, %v978
        %v985 = vor.u32 %v983, %v984
        %v986 = vshll.u32 2131351028, %v977
        %v987 = vshrl.u32 2102212464, %v978
        %v988 = vor.u32 %v986, %v987
        %v989 = vshll.u32 2102212464, %v977
        %v990 = vshrl.u32 920167782, %v978
        %v991 = vor.u32 %v989, %v990
        %v992 = vshll.u32 920167782, %v977
        %v993 = vshrl.u32 1326507024, %v978
        %v994 = vor.u32 %v992, %v993
        %vm995 = vcmp.lt.s32.totalorder %v976, 1
        %vm996 = vcmp.lt.s32.totalorder %v976, 2
        %vm997 = vcmp.lt.s32.totalorder %v976, 3
        %vm998 = vcmp.lt.s32.totalorder %v976, 4
        %v999 = vsel %vm995, %v979, %v982
        %v1000 = vsel %vm998, %v988, 2102212464
        %v1001 = vsel %vm997, %v985, %v1000
        %v1002 = vsel %vm996, %v999, %v1001
        %v1003 = vsel %vm995, %v982, %v985
        %v1004 = vsel %vm998, %v991, 920167782
        %v1005 = vsel %vm997, %v988, %v1004
        %v1006 = vsel %vm996, %v1003, %v1005
        %v1007 = vsel %vm995, %v985, %v988
        %v1008 = vsel %vm998, %v994, 1326507024
        %v1009 = vsel %vm997, %v991, %v1008
        %v1010 = vsel %vm996, %v1007, %v1009
        %v1011 = vshll.u32 %v971, 8
        %v1012 = vmul.u32.u64.compose %v1011, %v1010
        %v1013 = vextract.low.u32 %v1012
        %v1014 = vextract.high.u32 %v1012
        %v1015 = vmul.u32.u64.compose %v1011, %v1006
        %v1016 = vextract.low.u32 %v1015
        %v1017 = vextract.high.u32 %v1015
        %v1018 = vmul.u32 %v1011, %v1002
        %v1019 = vadd.s32 %v1014, %v1016
        %vm1020 = vc.u32 %v1014, %v1016
        %v1021 = vadd.s32 %v1017, 1
        %v1022 = vsel %vm1020, %v1021, %v1017
        %v1023 = vadd.s32 %v1018, %v1022
        %v1024 = vadd.s32 %v1023, 536870912
        %v1025 = vshrl.u32 %v1024, 30
        %v1026 = vshll.u32 %v1025, 30
        %v1027 = vsub.s32 %v1023, %v1026
        %vm1028 = vcmp.lt.s32.totalorder %v1027, 0
        %v1029 = vsub.s32 0, %v1027
        %v1030 = vsel %vm1028, %v1029, %v1027
        %v1031 = vclz %v1030
        %v1032 = vsub.s32 %v1031, 2
        %vm1033 = vcmp.gt.s32.totalorder 0, %v1032
        %v1034 = vsel %vm1033, 0, %v1032
        %v1035 = vsub.s32 32, %v1034
        %v1036 = vshll.u32 %v1027, %v1034
        %v1037 = vshrl.u32 %v1019, %v1035
        %v1038 = vor.u32 %v1036, %v1037
        %v1039 = vsub.s32 4294967266, %v1034
        %v1040 = vadd.s32 %v1039, 127
        %v1041 = vshll.u32 %v1040, 23
        %v1042 = vor.u32 4788187, %v1041
        %v1043 = vand.u32 2147483647, %v1042
        %v1045 = vcvt.s32.f32 %v1038
        %v1046 = vmul.f32 %v1045, %v1043
        %v1047 = vxor.u32 %v1046, 2147483648
        %v1048 = vsel %vm965, %v1047, %v1046
        %v1049 = vsub.s32 4, %v1025
        %v1050 = vsel %vm965, %v1049, %v1025
        %v1051 = vsel %vm964, %v437, %v1048
        %v1052 = vsel %vm964, 0, %v1050
        %v1053 = vcosq.f32.pop %v1051
        %v1054 = vsinq.f32.pop %v1051
        %vm1055 = vweird.f32 %v437
        %v1056 = vand.u32 %v1052, 3
        %vm1057 = vcmp.lt.s32.totalorder %v1056, 2
        %vm1058 = vcmp.eq.s32.totalorder %v1056, 0
        %v1059 = vxor.u32 %v1054, 2147483648
        %v1060 = vsel %vm1058, %v1053, %v1059
        %vm1061 = vcmp.eq.s32.totalorder %v1056, 2
        %v1062 = vxor.u32 %v1053, 2147483648
        %v1063 = vsel %vm1061, %v1062, %v1054
        %v1064 = vsel %vm1057, %v1060, %v1063
        %v1065 = vsel %vm1055, nan, %v1064
        %v1066 = vand.u32 2147483647, %v438
        %vm1067 = vcmp.le.f32.partialorder %v1066, 0.7853982
        %vm1068 = vcmp.lt.s32.totalorder %v438, 0
        %v1069 = vand.u32 %v438, 2139095040
        %v1070 = vshrl.u32 %v1069, 23
        %v1071 = vsub.s32 %v1070, 127
        %v1072 = vand.u32 2147483647, %v438
        %v1073 = vand.u32 %v1072, 8388607
        %v1074 = vor.u32 %v1073, 8388608
        %v1075 = vsub.s32 0, %v1074
        %v1076 = vadd.s32 %v1071, 1
        %vm1077 = vcmp.gt.s32.totalorder %v1076, 0
        %v1078 = vsel %vm1077, %v1076, 0
        %v1079 = vshrl.u32 %v1078, 5
        %v1080 = vand.u32 %v1078, 31
        %v1081 = vsub.s32 32, %v1080
        %v1082 = vshrl.u32 683565275, %v1081
        %v1083 = vshll.u32 683565275, %v1080
        %v1084 = vshrl.u32 2475754826, %v1081
        %v1085 = vor.u32 %v1083, %v1084
        %v1086 = vshll.u32 2475754826, %v1080
        %v1087 = vshrl.u32 2131351028, %v1081
        %v1088 = vor.u32 %v1086, %v1087
        %v1089 = vshll.u32 2131351028, %v1080
        %v1090 = vshrl.u32 2102212464, %v1081
        %v1091 = vor.u32 %v1089, %v1090
        %v1092 = vshll.u32 2102212464, %v1080
        %v1093 = vshrl.u32 920167782, %v1081
        %v1094 = vor.u32 %v1092, %v1093
        %v1095 = vshll.u32 920167782, %v1080
        %v1096 = vshrl.u32 1326507024, %v1081
        %v1097 = vor.u32 %v1095, %v1096
        %vm1098 = vcmp.lt.s32.totalorder %v1079, 1
        %vm1099 = vcmp.lt.s32.totalorder %v1079, 2
        %vm1100 = vcmp.lt.s32.totalorder %v1079, 3
        %vm1101 = vcmp.lt.s32.totalorder %v1079, 4
        %v1102 = vsel %vm1098, %v1082, %v1085
        %v1103 = vsel %vm1101, %v1091, 2102212464
        %v1104 = vsel %vm1100, %v1088, %v1103
        %v1105 = vsel %vm1099, %v1102, %v1104
        %v1106 = vsel %vm1098, %v1085, %v1088
        %v1107 = vsel %vm1101, %v1094, 920167782
        %v1108 = vsel %vm1100, %v1091, %v1107
        %v1109 = vsel %vm1099, %v1106, %v1108
        %v1110 = vsel %vm1098, %v1088, %v1091
        %v1111 = vsel %vm1101, %v1097, 1326507024
        %v1112 = vsel %vm1100, %v1094, %v1111
        %v1113 = vsel %vm1099, %v1110, %v1112
        %v1114 = vshll.u32 %v1074, 8
        %v1115 = vmul.u32.u64.compose %v1114, %v1113
        %v1116 = vextract.low.u32 %v1115
        %v1117 = vextract.high.u32 %v1115
        %v1118 = vmul.u32.u64.compose %v1114, %v1109
        %v1119 = vextract.low.u32 %v1118
        %v1120 = vextract.high.u32 %v1118
        %v1121 = vmul.u32 %v1114, %v1105
        %v1122 = vadd.s32 %v1117, %v1119
        %vm1123 = vc.u32 %v1117, %v1119
        %v1124 = vadd.s32 %v1120, 1
        %v1125 = vsel %vm1123, %v1124, %v1120
        %v1126 = vadd.s32 %v1121, %v1125
        %v1127 = vadd.s32 %v1126, 536870912
        %v1128 = vshrl.u32 %v1127, 30
        %v1129 = vshll.u32 %v1128, 30
        %v1130 = vsub.s32 %v1126, %v1129
        %vm1131 = vcmp.lt.s32.totalorder %v1130, 0
        %v1132 = vsub.s32 0, %v1130
        %v1133 = vsel %vm1131, %v1132, %v1130
        %v1134 = vclz %v1133
        %v1135 = vsub.s32 %v1134, 2
        %vm1136 = vcmp.gt.s32.totalorder 0, %v1135
        %v1137 = vsel %vm1136, 0, %v1135
        %v1138 = vsub.s32 32, %v1137
        %v1139 = vshll.u32 %v1130, %v1137
        %v1140 = vshrl.u32 %v1122, %v1138
        %v1141 = vor.u32 %v1139, %v1140
        %v1142 = vsub.s32 4294967266, %v1137
        %v1143 = vadd.s32 %v1142, 127
        %v1144 = vshll.u32 %v1143, 23
        %v1145 = vor.u32 4788187, %v1144
        %v1146 = vand.u32 2147483647, %v1145
        %v1148 = vcvt.s32.f32 %v1141
        %v1149 = vmul.f32 %v1148, %v1146
        %v1150 = vxor.u32 %v1149, 2147483648
        %v1151 = vsel %vm1068, %v1150, %v1149
        %v1152 = vsub.s32 4, %v1128
        %v1153 = vsel %vm1068, %v1152, %v1128
        %v1154 = vsel %vm1067, %v438, %v1151
        %v1155 = vsel %vm1067, 0, %v1153
        %v1156 = vcosq.f32.pop %v1154
        %v1157 = vsinq.f32.pop %v1154
        %vm1158 = vweird.f32 %v438
        %v1159 = vand.u32 %v1155, 3
        %vm1160 = vcmp.lt.s32.totalorder %v1159, 2
        %vm1161 = vcmp.eq.s32.totalorder %v1159, 0
        %v1162 = vxor.u32 %v1157, 2147483648
        %v1163 = vsel %vm1161, %v1156, %v1162
        %vm1164 = vcmp.eq.s32.totalorder %v1159, 2
        %v1165 = vxor.u32 %v1156, 2147483648
        %v1166 = vsel %vm1164, %v1165, %v1157
        %v1167 = vsel %vm1160, %v1163, %v1166
        %v1168 = vsel %vm1158, nan, %v1167
        %v1169 = vand.u32 2147483647, %v439
        %vm1170 = vcmp.le.f32.partialorder %v1169, 0.7853982
        %vm1171 = vcmp.lt.s32.totalorder %v439, 0
        %v1172 = vand.u32 %v439, 2139095040
        %v1173 = vshrl.u32 %v1172, 23
        %v1174 = vsub.s32 %v1173, 127
        %v1175 = vand.u32 2147483647, %v439
        %v1176 = vand.u32 %v1175, 8388607
        %v1177 = vor.u32 %v1176, 8388608
        %v1178 = vsub.s32 0, %v1177
        %v1179 = vadd.s32 %v1174, 1
        %vm1180 = vcmp.gt.s32.totalorder %v1179, 0
        %v1181 = vsel %vm1180, %v1179, 0
        %v1182 = vshrl.u32 %v1181, 5
        %v1183 = vand.u32 %v1181, 31
        %v1184 = vsub.s32 32, %v1183
        %v1185 = vshrl.u32 683565275, %v1184
        %v1186 = vshll.u32 683565275, %v1183
        %v1187 = vshrl.u32 2475754826, %v1184
        %v1188 = vor.u32 %v1186, %v1187
        %v1189 = vshll.u32 2475754826, %v1183
        %v1190 = vshrl.u32 2131351028, %v1184
        %v1191 = vor.u32 %v1189, %v1190
        %v1192 = vshll.u32 2131351028, %v1183
        %v1193 = vshrl.u32 2102212464, %v1184
        %v1194 = vor.u32 %v1192, %v1193
        %v1195 = vshll.u32 2102212464, %v1183
        %v1196 = vshrl.u32 920167782, %v1184
        %v1197 = vor.u32 %v1195, %v1196
        %v1198 = vshll.u32 920167782, %v1183
        %v1199 = vshrl.u32 1326507024, %v1184
        %v1200 = vor.u32 %v1198, %v1199
        %vm1201 = vcmp.lt.s32.totalorder %v1182, 1
        %vm1202 = vcmp.lt.s32.totalorder %v1182, 2
        %vm1203 = vcmp.lt.s32.totalorder %v1182, 3
        %vm1204 = vcmp.lt.s32.totalorder %v1182, 4
        %v1205 = vsel %vm1201, %v1185, %v1188
        %v1206 = vsel %vm1204, %v1194, 2102212464
        %v1207 = vsel %vm1203, %v1191, %v1206
        %v1208 = vsel %vm1202, %v1205, %v1207
        %v1209 = vsel %vm1201, %v1188, %v1191
        %v1210 = vsel %vm1204, %v1197, 920167782
        %v1211 = vsel %vm1203, %v1194, %v1210
        %v1212 = vsel %vm1202, %v1209, %v1211
        %v1213 = vsel %vm1201, %v1191, %v1194
        %v1214 = vsel %vm1204, %v1200, 1326507024
        %v1215 = vsel %vm1203, %v1197, %v1214
        %v1216 = vsel %vm1202, %v1213, %v1215
        %v1217 = vshll.u32 %v1177, 8
        %v1218 = vmul.u32.u64.compose %v1217, %v1216
        %v1219 = vextract.low.u32 %v1218
        %v1220 = vextract.high.u32 %v1218
        %v1221 = vmul.u32.u64.compose %v1217, %v1212
        %v1222 = vextract.low.u32 %v1221
        %v1223 = vextract.high.u32 %v1221
        %v1224 = vmul.u32 %v1217, %v1208
        %v1225 = vadd.s32 %v1220, %v1222
        %vm1226 = vc.u32 %v1220, %v1222
        %v1227 = vadd.s32 %v1223, 1
        %v1228 = vsel %vm1226, %v1227, %v1223
        %v1229 = vadd.s32 %v1224, %v1228
        %v1230 = vadd.s32 %v1229, 536870912
        %v1231 = vshrl.u32 %v1230, 30
        %v1232 = vshll.u32 %v1231, 30
        %v1233 = vsub.s32 %v1229, %v1232
        %vm1234 = vcmp.lt.s32.totalorder %v1233, 0
        %v1235 = vsub.s32 0, %v1233
        %v1236 = vsel %vm1234, %v1235, %v1233
        %v1237 = vclz %v1236
        %v1238 = vsub.s32 %v1237, 2
        %vm1239 = vcmp.gt.s32.totalorder 0, %v1238
        %v1240 = vsel %vm1239, 0, %v1238
        %v1241 = vsub.s32 32, %v1240
        %v1242 = vshll.u32 %v1233, %v1240
        %v1243 = vshrl.u32 %v1225, %v1241
        %v1244 = vor.u32 %v1242, %v1243
        %v1245 = vsub.s32 4294967266, %v1240
        %v1246 = vadd.s32 %v1245, 127
        %v1247 = vshll.u32 %v1246, 23
        %v1248 = vor.u32 4788187, %v1247
        %v1249 = vand.u32 2147483647, %v1248
        %v1251 = vcvt.s32.f32 %v1244
        %v1252 = vmul.f32 %v1251, %v1249
        %v1253 = vxor.u32 %v1252, 2147483648
        %v1254 = vsel %vm1171, %v1253, %v1252
        %v1255 = vsub.s32 4, %v1231
        %v1256 = vsel %vm1171, %v1255, %v1231
        %v1257 = vsel %vm1170, %v439, %v1254
        %v1258 = vsel %vm1170, 0, %v1256
        %v1259 = vcosq.f32.pop %v1257
        %v1260 = vsinq.f32.pop %v1257
        %vm1261 = vweird.f32 %v439
        %v1262 = vand.u32 %v1258, 3
        %vm1263 = vcmp.lt.s32.totalorder %v1262, 2
        %vm1264 = vcmp.eq.s32.totalorder %v1262, 0
        %v1265 = vxor.u32 %v1260, 2147483648
        %v1266 = vsel %vm1264, %v1259, %v1265
        %vm1267 = vcmp.eq.s32.totalorder %v1262, 2
        %v1268 = vxor.u32 %v1259, 2147483648
        %v1269 = vsel %vm1267, %v1268, %v1260
        %v1270 = vsel %vm1263, %v1266, %v1269
        %v1271 = vsel %vm1261, nan, %v1270
        %v1272 = vand.u32 2147483647, %v440
        %vm1273 = vcmp.le.f32.partialorder %v1272, 0.7853982
        %vm1274 = vcmp.lt.s32.totalorder %v440, 0
        %v1275 = vand.u32 %v440, 2139095040
        %v1276 = vshrl.u32 %v1275, 23
        %v1277 = vsub.s32 %v1276, 127
        %v1278 = vand.u32 2147483647, %v440
        %v1279 = vand.u32 %v1278, 8388607
        %v1280 = vor.u32 %v1279, 8388608
        %v1281 = vsub.s32 0, %v1280
        %v1282 = vadd.s32 %v1277, 1
        %vm1283 = vcmp.gt.s32.totalorder %v1282, 0
        %v1284 = vsel %vm1283, %v1282, 0
        %v1285 = vshrl.u32 %v1284, 5
        %v1286 = vand.u32 %v1284, 31
        %v1287 = vsub.s32 32, %v1286
        %v1288 = vshrl.u32 683565275, %v1287
        %v1289 = vshll.u32 683565275, %v1286
        %v1290 = vshrl.u32 2475754826, %v1287
        %v1291 = vor.u32 %v1289, %v1290
        %v1292 = vshll.u32 2475754826, %v1286
        %v1293 = vshrl.u32 2131351028, %v1287
        %v1294 = vor.u32 %v1292, %v1293
        %v1295 = vshll.u32 2131351028, %v1286
        %v1296 = vshrl.u32 2102212464, %v1287
        %v1297 = vor.u32 %v1295, %v1296
        %v1298 = vshll.u32 2102212464, %v1286
        %v1299 = vshrl.u32 920167782, %v1287
        %v1300 = vor.u32 %v1298, %v1299
        %v1301 = vshll.u32 920167782, %v1286
        %v1302 = vshrl.u32 1326507024, %v1287
        %v1303 = vor.u32 %v1301, %v1302
        %vm1304 = vcmp.lt.s32.totalorder %v1285, 1
        %vm1305 = vcmp.lt.s32.totalorder %v1285, 2
        %vm1306 = vcmp.lt.s32.totalorder %v1285, 3
        %vm1307 = vcmp.lt.s32.totalorder %v1285, 4
        %v1308 = vsel %vm1304, %v1288, %v1291
        %v1309 = vsel %vm1307, %v1297, 2102212464
        %v1310 = vsel %vm1306, %v1294, %v1309
        %v1311 = vsel %vm1305, %v1308, %v1310
        %v1312 = vsel %vm1304, %v1291, %v1294
        %v1313 = vsel %vm1307, %v1300, 920167782
        %v1314 = vsel %vm1306, %v1297, %v1313
        %v1315 = vsel %vm1305, %v1312, %v1314
        %v1316 = vsel %vm1304, %v1294, %v1297
        %v1317 = vsel %vm1307, %v1303, 1326507024
        %v1318 = vsel %vm1306, %v1300, %v1317
        %v1319 = vsel %vm1305, %v1316, %v1318
        %v1320 = vshll.u32 %v1280, 8
        %v1321 = vmul.u32.u64.compose %v1320, %v1319
        %v1322 = vextract.low.u32 %v1321
        %v1323 = vextract.high.u32 %v1321
        %v1324 = vmul.u32.u64.compose %v1320, %v1315
        %v1325 = vextract.low.u32 %v1324
        %v1326 = vextract.high.u32 %v1324
        %v1327 = vmul.u32 %v1320, %v1311
        %v1328 = vadd.s32 %v1323, %v1325
        %vm1329 = vc.u32 %v1323, %v1325
        %v1330 = vadd.s32 %v1326, 1
        %v1331 = vsel %vm1329, %v1330, %v1326
        %v1332 = vadd.s32 %v1327, %v1331
        %v1333 = vadd.s32 %v1332, 536870912
        %v1334 = vshrl.u32 %v1333, 30
        %v1335 = vshll.u32 %v1334, 30
        %v1336 = vsub.s32 %v1332, %v1335
        %vm1337 = vcmp.lt.s32.totalorder %v1336, 0
        %v1338 = vsub.s32 0, %v1336
        %v1339 = vsel %vm1337, %v1338, %v1336
        %v1340 = vclz %v1339
        %v1341 = vsub.s32 %v1340, 2
        %vm1342 = vcmp.gt.s32.totalorder 0, %v1341
        %v1343 = vsel %vm1342, 0, %v1341
        %v1344 = vsub.s32 32, %v1343
        %v1345 = vshll.u32 %v1336, %v1343
        %v1346 = vshrl.u32 %v1328, %v1344
        %v1347 = vor.u32 %v1345, %v1346
        %v1348 = vsub.s32 4294967266, %v1343
        %v1349 = vadd.s32 %v1348, 127
        %v1350 = vshll.u32 %v1349, 23
        %v1351 = vor.u32 4788187, %v1350
        %v1352 = vand.u32 2147483647, %v1351
        %v1354 = vcvt.s32.f32 %v1347
        %v1355 = vmul.f32 %v1354, %v1352
        %v1356 = vxor.u32 %v1355, 2147483648
        %v1357 = vsel %vm1274, %v1356, %v1355
        %v1358 = vsub.s32 4, %v1334
        %v1359 = vsel %vm1274, %v1358, %v1334
        %v1360 = vsel %vm1273, %v440, %v1357
        %v1361 = vsel %vm1273, 0, %v1359
        %v1362 = vcosq.f32.pop %v1360
        %v1363 = vsinq.f32.pop %v1360
        %vm1364 = vweird.f32 %v440
        %v1365 = vand.u32 %v1361, 3
        %vm1366 = vcmp.lt.s32.totalorder %v1365, 2
        %vm1367 = vcmp.eq.s32.totalorder %v1365, 0
        %v1368 = vxor.u32 %v1363, 2147483648
        %v1369 = vsel %vm1367, %v1362, %v1368
        %vm1370 = vcmp.eq.s32.totalorder %v1365, 2
        %v1371 = vxor.u32 %v1362, 2147483648
        %v1372 = vsel %vm1370, %v1371, %v1363
        %v1373 = vsel %vm1366, %v1369, %v1372
        %v1374 = vsel %vm1364, nan, %v1373
        %v1375 = vand.u32 2147483647, %v441
        %vm1376 = vcmp.le.f32.partialorder %v1375, 0.7853982
        %vm1377 = vcmp.lt.s32.totalorder %v441, 0
        %v1378 = vand.u32 %v441, 2139095040
        %v1379 = vshrl.u32 %v1378, 23
        %v1380 = vsub.s32 %v1379, 127
        %v1381 = vand.u32 2147483647, %v441
        %v1382 = vand.u32 %v1381, 8388607
        %v1383 = vor.u32 %v1382, 8388608
        %v1384 = vsub.s32 0, %v1383
        %v1385 = vadd.s32 %v1380, 1
        %vm1386 = vcmp.gt.s32.totalorder %v1385, 0
        %v1387 = vsel %vm1386, %v1385, 0
        %v1388 = vshrl.u32 %v1387, 5
        %v1389 = vand.u32 %v1387, 31
        %v1390 = vsub.s32 32, %v1389
        %v1391 = vshrl.u32 683565275, %v1390
        %v1392 = vshll.u32 683565275, %v1389
        %v1393 = vshrl.u32 2475754826, %v1390
        %v1394 = vor.u32 %v1392, %v1393
        %v1395 = vshll.u32 2475754826, %v1389
        %v1396 = vshrl.u32 2131351028, %v1390
        %v1397 = vor.u32 %v1395, %v1396
        %v1398 = vshll.u32 2131351028, %v1389
        %v1399 = vshrl.u32 2102212464, %v1390
        %v1400 = vor.u32 %v1398, %v1399
        %v1401 = vshll.u32 2102212464, %v1389
        %v1402 = vshrl.u32 920167782, %v1390
        %v1403 = vor.u32 %v1401, %v1402
        %v1404 = vshll.u32 920167782, %v1389
        %v1405 = vshrl.u32 1326507024, %v1390
        %v1406 = vor.u32 %v1404, %v1405
        %vm1407 = vcmp.lt.s32.totalorder %v1388, 1
        %vm1408 = vcmp.lt.s32.totalorder %v1388, 2
        %vm1409 = vcmp.lt.s32.totalorder %v1388, 3
        %vm1410 = vcmp.lt.s32.totalorder %v1388, 4
        %v1411 = vsel %vm1407, %v1391, %v1394
        %v1412 = vsel %vm1410, %v1400, 2102212464
        %v1413 = vsel %vm1409, %v1397, %v1412
        %v1414 = vsel %vm1408, %v1411, %v1413
        %v1415 = vsel %vm1407, %v1394, %v1397
        %v1416 = vsel %vm1410, %v1403, 920167782
        %v1417 = vsel %vm1409, %v1400, %v1416
        %v1418 = vsel %vm1408, %v1415, %v1417
        %v1419 = vsel %vm1407, %v1397, %v1400
        %v1420 = vsel %vm1410, %v1406, 1326507024
        %v1421 = vsel %vm1409, %v1403, %v1420
        %v1422 = vsel %vm1408, %v1419, %v1421
        %v1423 = vshll.u32 %v1383, 8
        %v1424 = vmul.u32.u64.compose %v1423, %v1422
        %v1425 = vextract.low.u32 %v1424
        %v1426 = vextract.high.u32 %v1424
        %v1427 = vmul.u32.u64.compose %v1423, %v1418
        %v1428 = vextract.low.u32 %v1427
        %v1429 = vextract.high.u32 %v1427
        %v1430 = vmul.u32 %v1423, %v1414
        %v1431 = vadd.s32 %v1426, %v1428
        %vm1432 = vc.u32 %v1426, %v1428
        %v1433 = vadd.s32 %v1429, 1
        %v1434 = vsel %vm1432, %v1433, %v1429
        %v1435 = vadd.s32 %v1430, %v1434
        %v1436 = vadd.s32 %v1435, 536870912
        %v1437 = vshrl.u32 %v1436, 30
        %v1438 = vshll.u32 %v1437, 30
        %v1439 = vsub.s32 %v1435, %v1438
        %vm1440 = vcmp.lt.s32.totalorder %v1439, 0
        %v1441 = vsub.s32 0, %v1439
        %v1442 = vsel %vm1440, %v1441, %v1439
        %v1443 = vclz %v1442
        %v1444 = vsub.s32 %v1443, 2
        %vm1445 = vcmp.gt.s32.totalorder 0, %v1444
        %v1446 = vsel %vm1445, 0, %v1444
        %v1447 = vsub.s32 32, %v1446
        %v1448 = vshll.u32 %v1439, %v1446
        %v1449 = vshrl.u32 %v1431, %v1447
        %v1450 = vor.u32 %v1448, %v1449
        %v1451 = vsub.s32 4294967266, %v1446
        %v1452 = vadd.s32 %v1451, 127
        %v1453 = vshll.u32 %v1452, 23
        %v1454 = vor.u32 4788187, %v1453
        %v1455 = vand.u32 2147483647, %v1454
        %v1457 = vcvt.s32.f32 %v1450
        %v1458 = vmul.f32 %v1457, %v1455
        %v1459 = vxor.u32 %v1458, 2147483648
        %v1460 = vsel %vm1377, %v1459, %v1458
        %v1461 = vsub.s32 4, %v1437
        %v1462 = vsel %vm1377, %v1461, %v1437
        %v1463 = vsel %vm1376, %v441, %v1460
        %v1464 = vsel %vm1376, 0, %v1462
        %v1465 = vcosq.f32.pop %v1463
        %v1466 = vsinq.f32.pop %v1463
        %vm1467 = vweird.f32 %v441
        %v1468 = vand.u32 %v1464, 3
        %vm1469 = vcmp.lt.s32.totalorder %v1468, 2
        %vm1470 = vcmp.eq.s32.totalorder %v1468, 0
        %v1471 = vxor.u32 %v1466, 2147483648
        %v1472 = vsel %vm1470, %v1465, %v1471
        %vm1473 = vcmp.eq.s32.totalorder %v1468, 2
        %v1474 = vxor.u32 %v1465, 2147483648
        %v1475 = vsel %vm1473, %v1474, %v1466
        %v1476 = vsel %vm1469, %v1472, %v1475
        %v1477 = vsel %vm1467, nan, %v1476
        %v1478 = vand.u32 2147483647, %v442
        %vm1479 = vcmp.le.f32.partialorder %v1478, 0.7853982
        %vm1480 = vcmp.lt.s32.totalorder %v442, 0
        %v1481 = vand.u32 %v442, 2139095040
        %v1482 = vshrl.u32 %v1481, 23
        %v1483 = vsub.s32 %v1482, 127
        %v1484 = vand.u32 2147483647, %v442
        %v1485 = vand.u32 %v1484, 8388607
        %v1486 = vor.u32 %v1485, 8388608
        %v1487 = vsub.s32 0, %v1486
        %v1488 = vadd.s32 %v1483, 1
        %vm1489 = vcmp.gt.s32.totalorder %v1488, 0
        %v1490 = vsel %vm1489, %v1488, 0
        %v1491 = vshrl.u32 %v1490, 5
        %v1492 = vand.u32 %v1490, 31
        %v1493 = vsub.s32 32, %v1492
        %v1494 = vshrl.u32 683565275, %v1493
        %v1495 = vshll.u32 683565275, %v1492
        %v1496 = vshrl.u32 2475754826, %v1493
        %v1497 = vor.u32 %v1495, %v1496
        %v1498 = vshll.u32 2475754826, %v1492
        %v1499 = vshrl.u32 2131351028, %v1493
        %v1500 = vor.u32 %v1498, %v1499
        %v1501 = vshll.u32 2131351028, %v1492
        %v1502 = vshrl.u32 2102212464, %v1493
        %v1503 = vor.u32 %v1501, %v1502
        %v1504 = vshll.u32 2102212464, %v1492
        %v1505 = vshrl.u32 920167782, %v1493
        %v1506 = vor.u32 %v1504, %v1505
        %v1507 = vshll.u32 920167782, %v1492
        %v1508 = vshrl.u32 1326507024, %v1493
        %v1509 = vor.u32 %v1507, %v1508
        %vm1510 = vcmp.lt.s32.totalorder %v1491, 1
        %vm1511 = vcmp.lt.s32.totalorder %v1491, 2
        %vm1512 = vcmp.lt.s32.totalorder %v1491, 3
        %vm1513 = vcmp.lt.s32.totalorder %v1491, 4
        %v1514 = vsel %vm1510, %v1494, %v1497
        %v1515 = vsel %vm1513, %v1503, 2102212464
        %v1516 = vsel %vm1512, %v1500, %v1515
        %v1517 = vsel %vm1511, %v1514, %v1516
        %v1518 = vsel %vm1510, %v1497, %v1500
        %v1519 = vsel %vm1513, %v1506, 920167782
        %v1520 = vsel %vm1512, %v1503, %v1519
        %v1521 = vsel %vm1511, %v1518, %v1520
        %v1522 = vsel %vm1510, %v1500, %v1503
        %v1523 = vsel %vm1513, %v1509, 1326507024
        %v1524 = vsel %vm1512, %v1506, %v1523
        %v1525 = vsel %vm1511, %v1522, %v1524
        %v1526 = vshll.u32 %v1486, 8
        %v1527 = vmul.u32.u64.compose %v1526, %v1525
        %v1528 = vextract.low.u32 %v1527
        %v1529 = vextract.high.u32 %v1527
        %v1530 = vmul.u32.u64.compose %v1526, %v1521
        %v1531 = vextract.low.u32 %v1530
        %v1532 = vextract.high.u32 %v1530
        %v1533 = vmul.u32 %v1526, %v1517
        %v1534 = vadd.s32 %v1529, %v1531
        %vm1535 = vc.u32 %v1529, %v1531
        %v1536 = vadd.s32 %v1532, 1
        %v1537 = vsel %vm1535, %v1536, %v1532
        %v1538 = vadd.s32 %v1533, %v1537
        %v1539 = vadd.s32 %v1538, 536870912
        %v1540 = vshrl.u32 %v1539, 30
        %v1541 = vshll.u32 %v1540, 30
        %v1542 = vsub.s32 %v1538, %v1541
        %vm1543 = vcmp.lt.s32.totalorder %v1542, 0
        %v1544 = vsub.s32 0, %v1542
        %v1545 = vsel %vm1543, %v1544, %v1542
        %v1546 = vclz %v1545
        %v1547 = vsub.s32 %v1546, 2
        %vm1548 = vcmp.gt.s32.totalorder 0, %v1547
        %v1549 = vsel %vm1548, 0, %v1547
        %v1550 = vsub.s32 32, %v1549
        %v1551 = vshll.u32 %v1542, %v1549
        %v1552 = vshrl.u32 %v1534, %v1550
        %v1553 = vor.u32 %v1551, %v1552
        %v1554 = vsub.s32 4294967266, %v1549
        %v1555 = vadd.s32 %v1554, 127
        %v1556 = vshll.u32 %v1555, 23
        %v1557 = vor.u32 4788187, %v1556
        %v1558 = vand.u32 2147483647, %v1557
        %v1560 = vcvt.s32.f32 %v1553
        %v1561 = vmul.f32 %v1560, %v1558
        %v1562 = vxor.u32 %v1561, 2147483648
        %v1563 = vsel %vm1480, %v1562, %v1561
        %v1564 = vsub.s32 4, %v1540
        %v1565 = vsel %vm1480, %v1564, %v1540
        %v1566 = vsel %vm1479, %v442, %v1563
        %v1567 = vsel %vm1479, 0, %v1565
        %v1568 = vcosq.f32.pop %v1566
        %v1569 = vsinq.f32.pop %v1566
        %vm1570 = vweird.f32 %v442
        %v1571 = vand.u32 %v1567, 3
        %vm1572 = vcmp.lt.s32.totalorder %v1571, 2
        %vm1573 = vcmp.eq.s32.totalorder %v1571, 0
        %v1574 = vxor.u32 %v1569, 2147483648
        %v1575 = vsel %vm1573, %v1568, %v1574
        %vm1576 = vcmp.eq.s32.totalorder %v1571, 2
        %v1577 = vxor.u32 %v1568, 2147483648
        %v1578 = vsel %vm1576, %v1577, %v1569
        %v1579 = vsel %vm1572, %v1575, %v1578
        %v1580 = vsel %vm1570, nan, %v1579
        %v1581 = vand.u32 2147483647, %v443
        %vm1582 = vcmp.le.f32.partialorder %v1581, 0.7853982
        %vm1583 = vcmp.lt.s32.totalorder %v443, 0
        %v1584 = vand.u32 %v443, 2139095040
        %v1585 = vshrl.u32 %v1584, 23
        %v1586 = vsub.s32 %v1585, 127
        %v1587 = vand.u32 2147483647, %v443
        %v1588 = vand.u32 %v1587, 8388607
        %v1589 = vor.u32 %v1588, 8388608
        %v1590 = vsub.s32 0, %v1589
        %v1591 = vadd.s32 %v1586, 1
        %vm1592 = vcmp.gt.s32.totalorder %v1591, 0
        %v1593 = vsel %vm1592, %v1591, 0
        %v1594 = vshrl.u32 %v1593, 5
        %v1595 = vand.u32 %v1593, 31
        %v1596 = vsub.s32 32, %v1595
        %v1597 = vshrl.u32 683565275, %v1596
        %v1598 = vshll.u32 683565275, %v1595
        %v1599 = vshrl.u32 2475754826, %v1596
        %v1600 = vor.u32 %v1598, %v1599
        %v1601 = vshll.u32 2475754826, %v1595
        %v1602 = vshrl.u32 2131351028, %v1596
        %v1603 = vor.u32 %v1601, %v1602
        %v1604 = vshll.u32 2131351028, %v1595
        %v1605 = vshrl.u32 2102212464, %v1596
        %v1606 = vor.u32 %v1604, %v1605
        %v1607 = vshll.u32 2102212464, %v1595
        %v1608 = vshrl.u32 920167782, %v1596
        %v1609 = vor.u32 %v1607, %v1608
        %v1610 = vshll.u32 920167782, %v1595
        %v1611 = vshrl.u32 1326507024, %v1596
        %v1612 = vor.u32 %v1610, %v1611
        %vm1613 = vcmp.lt.s32.totalorder %v1594, 1
        %vm1614 = vcmp.lt.s32.totalorder %v1594, 2
        %vm1615 = vcmp.lt.s32.totalorder %v1594, 3
        %vm1616 = vcmp.lt.s32.totalorder %v1594, 4
        %v1617 = vsel %vm1613, %v1597, %v1600
        %v1618 = vsel %vm1616, %v1606, 2102212464
        %v1619 = vsel %vm1615, %v1603, %v1618
        %v1620 = vsel %vm1614, %v1617, %v1619
        %v1621 = vsel %vm1613, %v1600, %v1603
        %v1622 = vsel %vm1616, %v1609, 920167782
        %v1623 = vsel %vm1615, %v1606, %v1622
        %v1624 = vsel %vm1614, %v1621, %v1623
        %v1625 = vsel %vm1613, %v1603, %v1606
        %v1626 = vsel %vm1616, %v1612, 1326507024
        %v1627 = vsel %vm1615, %v1609, %v1626
        %v1628 = vsel %vm1614, %v1625, %v1627
        %v1629 = vshll.u32 %v1589, 8
        %v1630 = vmul.u32.u64.compose %v1629, %v1628
        %v1631 = vextract.low.u32 %v1630
        %v1632 = vextract.high.u32 %v1630
        %v1633 = vmul.u32.u64.compose %v1629, %v1624
        %v1634 = vextract.low.u32 %v1633
        %v1635 = vextract.high.u32 %v1633
        %v1636 = vmul.u32 %v1629, %v1620
        %v1637 = vadd.s32 %v1632, %v1634
        %vm1638 = vc.u32 %v1632, %v1634
        %v1639 = vadd.s32 %v1635, 1
        %v1640 = vsel %vm1638, %v1639, %v1635
        %v1641 = vadd.s32 %v1636, %v1640
        %v1642 = vadd.s32 %v1641, 536870912
        %v1643 = vshrl.u32 %v1642, 30
        %v1644 = vshll.u32 %v1643, 30
        %v1645 = vsub.s32 %v1641, %v1644
        %vm1646 = vcmp.lt.s32.totalorder %v1645, 0
        %v1647 = vsub.s32 0, %v1645
        %v1648 = vsel %vm1646, %v1647, %v1645
        %v1649 = vclz %v1648
        %v1650 = vsub.s32 %v1649, 2
        %vm1651 = vcmp.gt.s32.totalorder 0, %v1650
        %v1652 = vsel %vm1651, 0, %v1650
        %v1653 = vsub.s32 32, %v1652
        %v1654 = vshll.u32 %v1645, %v1652
        %v1655 = vshrl.u32 %v1637, %v1653
        %v1656 = vor.u32 %v1654, %v1655
        %v1657 = vsub.s32 4294967266, %v1652
        %v1658 = vadd.s32 %v1657, 127
        %v1659 = vshll.u32 %v1658, 23
        %v1660 = vor.u32 4788187, %v1659
        %v1661 = vand.u32 2147483647, %v1660
        %v1663 = vcvt.s32.f32 %v1656
        %v1664 = vmul.f32 %v1663, %v1661
        %v1665 = vxor.u32 %v1664, 2147483648
        %v1666 = vsel %vm1583, %v1665, %v1664
        %v1667 = vsub.s32 4, %v1643
        %v1668 = vsel %vm1583, %v1667, %v1643
        %v1669 = vsel %vm1582, %v443, %v1666
        %v1670 = vsel %vm1582, 0, %v1668
        %v1671 = vcosq.f32.pop %v1669
        %v1672 = vsinq.f32.pop %v1669
        %vm1673 = vweird.f32 %v443
        %v1674 = vand.u32 %v1670, 3
        %vm1675 = vcmp.lt.s32.totalorder %v1674, 2
        %vm1676 = vcmp.eq.s32.totalorder %v1674, 0
        %v1677 = vxor.u32 %v1672, 2147483648
        %v1678 = vsel %vm1676, %v1671, %v1677
        %vm1679 = vcmp.eq.s32.totalorder %v1674, 2
        %v1680 = vxor.u32 %v1671, 2147483648
        %v1681 = vsel %vm1679, %v1680, %v1672
        %v1682 = vsel %vm1675, %v1678, %v1681
        %v1683 = vsel %vm1673, nan, %v1682
        %v1684 = vand.u32 2147483647, %v444
        %vm1685 = vcmp.le.f32.partialorder %v1684, 0.7853982
        %vm1686 = vcmp.lt.s32.totalorder %v444, 0
        %v1687 = vand.u32 %v444, 2139095040
        %v1688 = vshrl.u32 %v1687, 23
        %v1689 = vsub.s32 %v1688, 127
        %v1690 = vand.u32 2147483647, %v444
        %v1691 = vand.u32 %v1690, 8388607
        %v1692 = vor.u32 %v1691, 8388608
        %v1693 = vsub.s32 0, %v1692
        %v1694 = vadd.s32 %v1689, 1
        %vm1695 = vcmp.gt.s32.totalorder %v1694, 0
        %v1696 = vsel %vm1695, %v1694, 0
        %v1697 = vshrl.u32 %v1696, 5
        %v1698 = vand.u32 %v1696, 31
        %v1699 = vsub.s32 32, %v1698
        %v1700 = vshrl.u32 683565275, %v1699
        %v1701 = vshll.u32 683565275, %v1698
        %v1702 = vshrl.u32 2475754826, %v1699
        %v1703 = vor.u32 %v1701, %v1702
        %v1704 = vshll.u32 2475754826, %v1698
        %v1705 = vshrl.u32 2131351028, %v1699
        %v1706 = vor.u32 %v1704, %v1705
        %v1707 = vshll.u32 2131351028, %v1698
        %v1708 = vshrl.u32 2102212464, %v1699
        %v1709 = vor.u32 %v1707, %v1708
        %v1710 = vshll.u32 2102212464, %v1698
        %v1711 = vshrl.u32 920167782, %v1699
        %v1712 = vor.u32 %v1710, %v1711
        %v1713 = vshll.u32 920167782, %v1698
        %v1714 = vshrl.u32 1326507024, %v1699
        %v1715 = vor.u32 %v1713, %v1714
        %vm1716 = vcmp.lt.s32.totalorder %v1697, 1
        %vm1717 = vcmp.lt.s32.totalorder %v1697, 2
        %vm1718 = vcmp.lt.s32.totalorder %v1697, 3
        %vm1719 = vcmp.lt.s32.totalorder %v1697, 4
        %v1720 = vsel %vm1716, %v1700, %v1703
        %v1721 = vsel %vm1719, %v1709, 2102212464
        %v1722 = vsel %vm1718, %v1706, %v1721
        %v1723 = vsel %vm1717, %v1720, %v1722
        %v1724 = vsel %vm1716, %v1703, %v1706
        %v1725 = vsel %vm1719, %v1712, 920167782
        %v1726 = vsel %vm1718, %v1709, %v1725
        %v1727 = vsel %vm1717, %v1724, %v1726
        %v1728 = vsel %vm1716, %v1706, %v1709
        %v1729 = vsel %vm1719, %v1715, 1326507024
        %v1730 = vsel %vm1718, %v1712, %v1729
        %v1731 = vsel %vm1717, %v1728, %v1730
        %v1732 = vshll.u32 %v1692, 8
        %v1733 = vmul.u32.u64.compose %v1732, %v1731
        %v1734 = vextract.low.u32 %v1733
        %v1735 = vextract.high.u32 %v1733
        %v1736 = vmul.u32.u64.compose %v1732, %v1727
        %v1737 = vextract.low.u32 %v1736
        %v1738 = vextract.high.u32 %v1736
        %v1739 = vmul.u32 %v1732, %v1723
        %v1740 = vadd.s32 %v1735, %v1737
        %vm1741 = vc.u32 %v1735, %v1737
        %v1742 = vadd.s32 %v1738, 1
        %v1743 = vsel %vm1741, %v1742, %v1738
        %v1744 = vadd.s32 %v1739, %v1743
        %v1745 = vadd.s32 %v1744, 536870912
        %v1746 = vshrl.u32 %v1745, 30
        %v1747 = vshll.u32 %v1746, 30
        %v1748 = vsub.s32 %v1744, %v1747
        %vm1749 = vcmp.lt.s32.totalorder %v1748, 0
        %v1750 = vsub.s32 0, %v1748
        %v1751 = vsel %vm1749, %v1750, %v1748
        %v1752 = vclz %v1751
        %v1753 = vsub.s32 %v1752, 2
        %vm1754 = vcmp.gt.s32.totalorder 0, %v1753
        %v1755 = vsel %vm1754, 0, %v1753
        %v1756 = vsub.s32 32, %v1755
        %v1757 = vshll.u32 %v1748, %v1755
        %v1758 = vshrl.u32 %v1740, %v1756
        %v1759 = vor.u32 %v1757, %v1758
        %v1760 = vsub.s32 4294967266, %v1755
        %v1761 = vadd.s32 %v1760, 127
        %v1762 = vshll.u32 %v1761, 23
        %v1763 = vor.u32 4788187, %v1762
        %v1764 = vand.u32 2147483647, %v1763
        %v1766 = vcvt.s32.f32 %v1759
        %v1767 = vmul.f32 %v1766, %v1764
        %v1768 = vxor.u32 %v1767, 2147483648
        %v1769 = vsel %vm1686, %v1768, %v1767
        %v1770 = vsub.s32 4, %v1746
        %v1771 = vsel %vm1686, %v1770, %v1746
        %v1772 = vsel %vm1685, %v444, %v1769
        %v1773 = vsel %vm1685, 0, %v1771
        %v1774 = vcosq.f32.pop %v1772
        %v1775 = vsinq.f32.pop %v1772
        %vm1776 = vweird.f32 %v444
        %v1777 = vand.u32 %v1773, 3
        %vm1778 = vcmp.lt.s32.totalorder %v1777, 2
        %vm1779 = vcmp.eq.s32.totalorder %v1777, 0
        %v1780 = vxor.u32 %v1775, 2147483648
        %v1781 = vsel %vm1779, %v1774, %v1780
        %vm1782 = vcmp.eq.s32.totalorder %v1777, 2
        %v1783 = vxor.u32 %v1774, 2147483648
        %v1784 = vsel %vm1782, %v1783, %v1775
        %v1785 = vsel %vm1778, %v1781, %v1784
        %v1786 = vsel %vm1776, nan, %v1785
        %v1787 = vand.u32 2147483647, %v445
        %vm1788 = vcmp.le.f32.partialorder %v1787, 0.7853982
        %vm1789 = vcmp.lt.s32.totalorder %v445, 0
        %v1790 = vand.u32 %v445, 2139095040
        %v1791 = vshrl.u32 %v1790, 23
        %v1792 = vsub.s32 %v1791, 127
        %v1793 = vand.u32 2147483647, %v445
        %v1794 = vand.u32 %v1793, 8388607
        %v1795 = vor.u32 %v1794, 8388608
        %v1796 = vsub.s32 0, %v1795
        %v1797 = vadd.s32 %v1792, 1
        %vm1798 = vcmp.gt.s32.totalorder %v1797, 0
        %v1799 = vsel %vm1798, %v1797, 0
        %v1800 = vshrl.u32 %v1799, 5
        %v1801 = vand.u32 %v1799, 31
        %v1802 = vsub.s32 32, %v1801
        %v1803 = vshrl.u32 683565275, %v1802
        %v1804 = vshll.u32 683565275, %v1801
        %v1805 = vshrl.u32 2475754826, %v1802
        %v1806 = vor.u32 %v1804, %v1805
        %v1807 = vshll.u32 2475754826, %v1801
        %v1808 = vshrl.u32 2131351028, %v1802
        %v1809 = vor.u32 %v1807, %v1808
        %v1810 = vshll.u32 2131351028, %v1801
        %v1811 = vshrl.u32 2102212464, %v1802
        %v1812 = vor.u32 %v1810, %v1811
        %v1813 = vshll.u32 2102212464, %v1801
        %v1814 = vshrl.u32 920167782, %v1802
        %v1815 = vor.u32 %v1813, %v1814
        %v1816 = vshll.u32 920167782, %v1801
        %v1817 = vshrl.u32 1326507024, %v1802
        %v1818 = vor.u32 %v1816, %v1817
        %vm1819 = vcmp.lt.s32.totalorder %v1800, 1
        %vm1820 = vcmp.lt.s32.totalorder %v1800, 2
        %vm1821 = vcmp.lt.s32.totalorder %v1800, 3
        %vm1822 = vcmp.lt.s32.totalorder %v1800, 4
        %v1823 = vsel %vm1819, %v1803, %v1806
        %v1824 = vsel %vm1822, %v1812, 2102212464
        %v1825 = vsel %vm1821, %v1809, %v1824
        %v1826 = vsel %vm1820, %v1823, %v1825
        %v1827 = vsel %vm1819, %v1806, %v1809
        %v1828 = vsel %vm1822, %v1815, 920167782
        %v1829 = vsel %vm1821, %v1812, %v1828
        %v1830 = vsel %vm1820, %v1827, %v1829
        %v1831 = vsel %vm1819, %v1809, %v1812
        %v1832 = vsel %vm1822, %v1818, 1326507024
        %v1833 = vsel %vm1821, %v1815, %v1832
        %v1834 = vsel %vm1820, %v1831, %v1833
        %v1835 = vshll.u32 %v1795, 8
        %v1836 = vmul.u32.u64.compose %v1835, %v1834
        %v1837 = vextract.low.u32 %v1836
        %v1838 = vextract.high.u32 %v1836
        %v1839 = vmul.u32.u64.compose %v1835, %v1830
        %v1840 = vextract.low.u32 %v1839
        %v1841 = vextract.high.u32 %v1839
        %v1842 = vmul.u32 %v1835, %v1826
        %v1843 = vadd.s32 %v1838, %v1840
        %vm1844 = vc.u32 %v1838, %v1840
        %v1845 = vadd.s32 %v1841, 1
        %v1846 = vsel %vm1844, %v1845, %v1841
        %v1847 = vadd.s32 %v1842, %v1846
        %v1848 = vadd.s32 %v1847, 536870912
        %v1849 = vshrl.u32 %v1848, 30
        %v1850 = vshll.u32 %v1849, 30
        %v1851 = vsub.s32 %v1847, %v1850
        %vm1852 = vcmp.lt.s32.totalorder %v1851, 0
        %v1853 = vsub.s32 0, %v1851
        %v1854 = vsel %vm1852, %v1853, %v1851
        %v1855 = vclz %v1854
        %v1856 = vsub.s32 %v1855, 2
        %vm1857 = vcmp.gt.s32.totalorder 0, %v1856
        %v1858 = vsel %vm1857, 0, %v1856
        %v1859 = vsub.s32 32, %v1858
        %v1860 = vshll.u32 %v1851, %v1858
        %v1861 = vshrl.u32 %v1843, %v1859
        %v1862 = vor.u32 %v1860, %v1861
        %v1863 = vsub.s32 4294967266, %v1858
        %v1864 = vadd.s32 %v1863, 127
        %v1865 = vshll.u32 %v1864, 23
        %v1866 = vor.u32 4788187, %v1865
        %v1867 = vand.u32 2147483647, %v1866
        %v1869 = vcvt.s32.f32 %v1862
        %v1870 = vmul.f32 %v1869, %v1867
        %v1871 = vxor.u32 %v1870, 2147483648
        %v1872 = vsel %vm1789, %v1871, %v1870
        %v1873 = vsub.s32 4, %v1849
        %v1874 = vsel %vm1789, %v1873, %v1849
        %v1875 = vsel %vm1788, %v445, %v1872
        %v1876 = vsel %vm1788, 0, %v1874
        %v1877 = vcosq.f32.pop %v1875
        %v1878 = vsinq.f32.pop %v1875
        %vm1879 = vweird.f32 %v445
        %v1880 = vand.u32 %v1876, 3
        %vm1881 = vcmp.lt.s32.totalorder %v1880, 2
        %vm1882 = vcmp.eq.s32.totalorder %v1880, 0
        %v1883 = vxor.u32 %v1878, 2147483648
        %v1884 = vsel %vm1882, %v1877, %v1883
        %vm1885 = vcmp.eq.s32.totalorder %v1880, 2
        %v1886 = vxor.u32 %v1877, 2147483648
        %v1887 = vsel %vm1885, %v1886, %v1878
        %v1888 = vsel %vm1881, %v1884, %v1887
        %v1889 = vsel %vm1879, nan, %v1888
        %v1890 = vand.u32 2147483647, %v446
        %vm1891 = vcmp.le.f32.partialorder %v1890, 0.7853982
        %vm1892 = vcmp.lt.s32.totalorder %v446, 0
        %v1893 = vand.u32 %v446, 2139095040
        %v1894 = vshrl.u32 %v1893, 23
        %v1895 = vsub.s32 %v1894, 127
        %v1896 = vand.u32 2147483647, %v446
        %v1897 = vand.u32 %v1896, 8388607
        %v1898 = vor.u32 %v1897, 8388608
        %v1899 = vsub.s32 0, %v1898
        %v1900 = vadd.s32 %v1895, 1
        %vm1901 = vcmp.gt.s32.totalorder %v1900, 0
        %v1902 = vsel %vm1901, %v1900, 0
        %v1903 = vshrl.u32 %v1902, 5
        %v1904 = vand.u32 %v1902, 31
        %v1905 = vsub.s32 32, %v1904
        %v1906 = vshrl.u32 683565275, %v1905
        %v1907 = vshll.u32 683565275, %v1904
        %v1908 = vshrl.u32 2475754826, %v1905
        %v1909 = vor.u32 %v1907, %v1908
        %v1910 = vshll.u32 2475754826, %v1904
        %v1911 = vshrl.u32 2131351028, %v1905
        %v1912 = vor.u32 %v1910, %v1911
        %v1913 = vshll.u32 2131351028, %v1904
        %v1914 = vshrl.u32 2102212464, %v1905
        %v1915 = vor.u32 %v1913, %v1914
        %v1916 = vshll.u32 2102212464, %v1904
        %v1917 = vshrl.u32 920167782, %v1905
        %v1918 = vor.u32 %v1916, %v1917
        %v1919 = vshll.u32 920167782, %v1904
        %v1920 = vshrl.u32 1326507024, %v1905
        %v1921 = vor.u32 %v1919, %v1920
        %vm1922 = vcmp.lt.s32.totalorder %v1903, 1
        %vm1923 = vcmp.lt.s32.totalorder %v1903, 2
        %vm1924 = vcmp.lt.s32.totalorder %v1903, 3
        %vm1925 = vcmp.lt.s32.totalorder %v1903, 4
        %v1926 = vsel %vm1922, %v1906, %v1909
        %v1927 = vsel %vm1925, %v1915, 2102212464
        %v1928 = vsel %vm1924, %v1912, %v1927
        %v1929 = vsel %vm1923, %v1926, %v1928
        %v1930 = vsel %vm1922, %v1909, %v1912
        %v1931 = vsel %vm1925, %v1918, 920167782
        %v1932 = vsel %vm1924, %v1915, %v1931
        %v1933 = vsel %vm1923, %v1930, %v1932
        %v1934 = vsel %vm1922, %v1912, %v1915
        %v1935 = vsel %vm1925, %v1921, 1326507024
        %v1936 = vsel %vm1924, %v1918, %v1935
        %v1937 = vsel %vm1923, %v1934, %v1936
        %v1938 = vshll.u32 %v1898, 8
        %v1939 = vmul.u32.u64.compose %v1938, %v1937
        %v1940 = vextract.low.u32 %v1939
        %v1941 = vextract.high.u32 %v1939
        %v1942 = vmul.u32.u64.compose %v1938, %v1933
        %v1943 = vextract.low.u32 %v1942
        %v1944 = vextract.high.u32 %v1942
        %v1945 = vmul.u32 %v1938, %v1929
        %v1946 = vadd.s32 %v1941, %v1943
        %vm1947 = vc.u32 %v1941, %v1943
        %v1948 = vadd.s32 %v1944, 1
        %v1949 = vsel %vm1947, %v1948, %v1944
        %v1950 = vadd.s32 %v1945, %v1949
        %v1951 = vadd.s32 %v1950, 536870912
        %v1952 = vshrl.u32 %v1951, 30
        %v1953 = vshll.u32 %v1952, 30
        %v1954 = vsub.s32 %v1950, %v1953
        %vm1955 = vcmp.lt.s32.totalorder %v1954, 0
        %v1956 = vsub.s32 0, %v1954
        %v1957 = vsel %vm1955, %v1956, %v1954
        %v1958 = vclz %v1957
        %v1959 = vsub.s32 %v1958, 2
        %vm1960 = vcmp.gt.s32.totalorder 0, %v1959
        %v1961 = vsel %vm1960, 0, %v1959
        %v1962 = vsub.s32 32, %v1961
        %v1963 = vshll.u32 %v1954, %v1961
        %v1964 = vshrl.u32 %v1946, %v1962
        %v1965 = vor.u32 %v1963, %v1964
        %v1966 = vsub.s32 4294967266, %v1961
        %v1967 = vadd.s32 %v1966, 127
        %v1968 = vshll.u32 %v1967, 23
        %v1969 = vor.u32 4788187, %v1968
        %v1970 = vand.u32 2147483647, %v1969
        %v1972 = vcvt.s32.f32 %v1965
        %v1973 = vmul.f32 %v1972, %v1970
        %v1974 = vxor.u32 %v1973, 2147483648
        %v1975 = vsel %vm1892, %v1974, %v1973
        %v1976 = vsub.s32 4, %v1952
        %v1977 = vsel %vm1892, %v1976, %v1952
        %v1978 = vsel %vm1891, %v446, %v1975
        %v1979 = vsel %vm1891, 0, %v1977
        %v1980 = vcosq.f32.pop %v1978
        %v1981 = vsinq.f32.pop %v1978
        %vm1982 = vweird.f32 %v446
        %v1983 = vand.u32 %v1979, 3
        %vm1984 = vcmp.lt.s32.totalorder %v1983, 2
        %vm1985 = vcmp.eq.s32.totalorder %v1983, 0
        %v1986 = vxor.u32 %v1981, 2147483648
        %v1987 = vsel %vm1985, %v1980, %v1986
        %vm1988 = vcmp.eq.s32.totalorder %v1983, 2
        %v1989 = vxor.u32 %v1980, 2147483648
        %v1990 = vsel %vm1988, %v1989, %v1981
        %v1991 = vsel %vm1984, %v1987, %v1990
        %v1992 = vsel %vm1982, nan, %v1991
        %v1993 = vand.u32 2147483647, %v447
        %vm1994 = vcmp.le.f32.partialorder %v1993, 0.7853982
        %vm1995 = vcmp.lt.s32.totalorder %v447, 0
        %v1996 = vand.u32 %v447, 2139095040
        %v1997 = vshrl.u32 %v1996, 23
        %v1998 = vsub.s32 %v1997, 127
        %v1999 = vand.u32 2147483647, %v447
        %v2000 = vand.u32 %v1999, 8388607
        %v2001 = vor.u32 %v2000, 8388608
        %v2002 = vsub.s32 0, %v2001
        %v2003 = vadd.s32 %v1998, 1
        %vm2004 = vcmp.gt.s32.totalorder %v2003, 0
        %v2005 = vsel %vm2004, %v2003, 0
        %v2006 = vshrl.u32 %v2005, 5
        %v2007 = vand.u32 %v2005, 31
        %v2008 = vsub.s32 32, %v2007
        %v2009 = vshrl.u32 683565275, %v2008
        %v2010 = vshll.u32 683565275, %v2007
        %v2011 = vshrl.u32 2475754826, %v2008
        %v2012 = vor.u32 %v2010, %v2011
        %v2013 = vshll.u32 2475754826, %v2007
        %v2014 = vshrl.u32 2131351028, %v2008
        %v2015 = vor.u32 %v2013, %v2014
        %v2016 = vshll.u32 2131351028, %v2007
        %v2017 = vshrl.u32 2102212464, %v2008
        %v2018 = vor.u32 %v2016, %v2017
        %v2019 = vshll.u32 2102212464, %v2007
        %v2020 = vshrl.u32 920167782, %v2008
        %v2021 = vor.u32 %v2019, %v2020
        %v2022 = vshll.u32 920167782, %v2007
        %v2023 = vshrl.u32 1326507024, %v2008
        %v2024 = vor.u32 %v2022, %v2023
        %vm2025 = vcmp.lt.s32.totalorder %v2006, 1
        %vm2026 = vcmp.lt.s32.totalorder %v2006, 2
        %vm2027 = vcmp.lt.s32.totalorder %v2006, 3
        %vm2028 = vcmp.lt.s32.totalorder %v2006, 4
        %v2029 = vsel %vm2025, %v2009, %v2012
        %v2030 = vsel %vm2028, %v2018, 2102212464
        %v2031 = vsel %vm2027, %v2015, %v2030
        %v2032 = vsel %vm2026, %v2029, %v2031
        %v2033 = vsel %vm2025, %v2012, %v2015
        %v2034 = vsel %vm2028, %v2021, 920167782
        %v2035 = vsel %vm2027, %v2018, %v2034
        %v2036 = vsel %vm2026, %v2033, %v2035
        %v2037 = vsel %vm2025, %v2015, %v2018
        %v2038 = vsel %vm2028, %v2024, 1326507024
        %v2039 = vsel %vm2027, %v2021, %v2038
        %v2040 = vsel %vm2026, %v2037, %v2039
        %v2041 = vshll.u32 %v2001, 8
        %v2042 = vmul.u32.u64.compose %v2041, %v2040
        %v2043 = vextract.low.u32 %v2042
        %v2044 = vextract.high.u32 %v2042
        %v2045 = vmul.u32.u64.compose %v2041, %v2036
        %v2046 = vextract.low.u32 %v2045
        %v2047 = vextract.high.u32 %v2045
        %v2048 = vmul.u32 %v2041, %v2032
        %v2049 = vadd.s32 %v2044, %v2046
        %vm2050 = vc.u32 %v2044, %v2046
        %v2051 = vadd.s32 %v2047, 1
        %v2052 = vsel %vm2050, %v2051, %v2047
        %v2053 = vadd.s32 %v2048, %v2052
        %v2054 = vadd.s32 %v2053, 536870912
        %v2055 = vshrl.u32 %v2054, 30
        %v2056 = vshll.u32 %v2055, 30
        %v2057 = vsub.s32 %v2053, %v2056
        %vm2058 = vcmp.lt.s32.totalorder %v2057, 0
        %v2059 = vsub.s32 0, %v2057
        %v2060 = vsel %vm2058, %v2059, %v2057
        %v2061 = vclz %v2060
        %v2062 = vsub.s32 %v2061, 2
        %vm2063 = vcmp.gt.s32.totalorder 0, %v2062
        %v2064 = vsel %vm2063, 0, %v2062
        %v2065 = vsub.s32 32, %v2064
        %v2066 = vshll.u32 %v2057, %v2064
        %v2067 = vshrl.u32 %v2049, %v2065
        %v2068 = vor.u32 %v2066, %v2067
        %v2069 = vsub.s32 4294967266, %v2064
        %v2070 = vadd.s32 %v2069, 127
        %v2071 = vshll.u32 %v2070, 23
        %v2072 = vor.u32 4788187, %v2071
        %v2073 = vand.u32 2147483647, %v2072
        %v2075 = vcvt.s32.f32 %v2068
        %v2076 = vmul.f32 %v2075, %v2073
        %v2077 = vxor.u32 %v2076, 2147483648
        %v2078 = vsel %vm1995, %v2077, %v2076
        %v2079 = vsub.s32 4, %v2055
        %v2080 = vsel %vm1995, %v2079, %v2055
        %v2081 = vsel %vm1994, %v447, %v2078
        %v2082 = vsel %vm1994, 0, %v2080
        %v2083 = vcosq.f32.pop %v2081
        %v2084 = vsinq.f32.pop %v2081
        %vm2085 = vweird.f32 %v447
        %v2086 = vand.u32 %v2082, 3
        %vm2087 = vcmp.lt.s32.totalorder %v2086, 2
        %vm2088 = vcmp.eq.s32.totalorder %v2086, 0
        %v2089 = vxor.u32 %v2084, 2147483648
        %v2090 = vsel %vm2088, %v2083, %v2089
        %vm2091 = vcmp.eq.s32.totalorder %v2086, 2
        %v2092 = vxor.u32 %v2083, 2147483648
        %v2093 = vsel %vm2091, %v2092, %v2084
        %v2094 = vsel %vm2087, %v2090, %v2093
        %v2095 = vsel %vm2085, nan, %v2094
        %2096 = vst [vmem:[%s210] sm:$0xff] %v550
        %2097 = vst [vmem:[%s210 + $0x8] sm:$0xff] %v653
        %2098 = vst [vmem:[%s210 + $0x10] sm:$0xff] %v756
        %2099 = vst [vmem:[%s210 + $0x18] sm:$0xff] %v859
        %2100 = vst [vmem:[%s210 + $0x20] sm:$0xff] %v962
        %2101 = vst [vmem:[%s210 + $0x28] sm:$0xff] %v1065
        %2102 = vst [vmem:[%s210 + $0x30] sm:$0xff] %v1168
        %2103 = vst [vmem:[%s210 + $0x38] sm:$0xff] %v1271
        %2104 = vst [vmem:[%s210 + $0x40] sm:$0xff] %v1374
        %2105 = vst [vmem:[%s210 + $0x48] sm:$0xff] %v1477
        %2106 = vst [vmem:[%s210 + $0x50] sm:$0xff] %v1580
        %2107 = vst [vmem:[%s210 + $0x58] sm:$0xff] %v1683
        %2108 = vst [vmem:[%s210 + $0x60] sm:$0xff] %v1786
        %2109 = vst [vmem:[%s210 + $0x68] sm:$0xff] %v1889
        %2110 = vst [vmem:[%s210 + $0x70] sm:$0xff] %v1992
        %2111 = vst [vmem:[%s210 + $0x78] sm:$0xff] %v2095
        %s2112 = sand.u32 %s97, 1
        %s2113 = scalar_lea.sflag [#allocation4], %s2112
        %s2114 = sand.u32 %s97, 1
        %s2115 = smul.addr %s2114, 128
        %s2116 = scalar_lea.vmem [#allocation8], %s2115
        // Predicated region
        $region45: #{tpu_custom_call.1} parent=31 // pred_check
          %p2117 = pneg %p107
        $region46: #{tpu_custom_call.1} parent=31 // pred_check_branch
          %2119 = sbr.rel (%p2117) target = $region48
        $region47: #{tpu_custom_call.1} parent=31 // pred_region
          %s2121 = ssub.s32 2048, 2048
          %2122 = vsyncadd %s2113, %s2121
          %s2123 = smul.addr %s21, 16
          %s2124 = smul.addr %s2123, 128
          %s2125 = scalar_lea.hbm %s3, %s2124
          %s2127 = sshll.u32 %s2116, 4
          %s2128 = int_to_ptr.vmem [resolvable:$true] %s2127
          %2130 = dma.vmem_to_hbm [thread:$0]  %s2128, 2048, %s2125, %s2113
        $region48: #{tpu_custom_call.1} parent=31 // pred_fallthru
          _
      $region32: #{tpu_custom_call.1} parent=5 // pred_fallthru
        _
      %p2131 = scmp.le.s32.totalorder 2, %s16
      // Predicated region
      $region49: #{tpu_custom_call.1} parent=5 // pred_check
        %p2132 = pneg %p2131
      $region50: #{tpu_custom_call.1} parent=5 // pred_check_branch
        %2134 = sbr.rel (%p2132) target = $region52
      $region51: #{tpu_custom_call.1} parent=5 // pred_region
        %s2135 = ssub.s32 %s16, 2
        // Predicated region
        $region53: #{tpu_custom_call.1} parent=51 // pred_check
          %p2136 = pneg %p113
        $region54: #{tpu_custom_call.1} parent=51 // pred_check_branch
          %2138 = sbr.rel (%p2136) target = $region56
        $region55: #{tpu_custom_call.1} parent=51 // pred_region
          %s2139 = sand.u32 %s98, 1
          %s2140 = scalar_lea.sflag [#allocation4], %s2139
          %s2141 = sand.u32 %s98, 1
          %s2142 = smul.addr %s2141, 128
          %s2143 = scalar_lea.vmem [#allocation8], %s2142
          %2144 = dma.done %s2140, 2048
        $region56: #{tpu_custom_call.1} parent=51 // pred_fallthru
          _
      $region52: #{tpu_custom_call.1} parent=5 // pred_fallthru
        _
    $region6: #{tpu_custom_call.1} parent=1 // loop_footer
      %s20 = sadd.s32 1, %s16
    $region7: #{tpu_custom_call.1} parent=1 // loop_footer_branch
      %15 = sbr.rel target = $region3
    $region8: #{tpu_custom_call.1} parent=1 // loop_exit
      _
    %2145 = vsyncpa [#allocation3], 1
    %s2146 = scalar_lea.sflag [#allocation3], 1
    %2147 = vsyncpa %s2146, 1
    %2148 = vsyncpa [#allocation6], 1
    %2149 = vsyncpa [#allocation4], 1
    %s2150 = scalar_lea.sflag [#allocation4], 1
    %2151 = vsyncpa %s2150, 1

</llo_original>
